<compile_context>
chip_gen: v7x
topology: tpu7x:2x2x1
jax: 0.10.0
libtpu: 0.0.40
codegen_flags: <defaults>
</compile_context>

<pallas_src>
import jax
import jax.numpy as jnp
from jax.experimental import pallas as pl
from jax.experimental.pallas import tpu as pltpu

# --- module hyper-params (small, consistent with the PyTorch __init__) ---
DIM = 3
C_DIM = 32
HIDDEN = 32
N_BLOCKS = 5
GAUSSIAN_VAL = 0.2
VAR = GAUSSIAN_VAL ** 2          # sample_mode == 'gaussian'


def decoder_kernel(q_ref, pp_ref, fea_ref, wc_ref, wblk_ref, bblk_ref, misc_ref,
                   out_ref):
    B, T, _ = q_ref.shape

    q = q_ref[...]          # (B, T, 3)
    pts = pp_ref[...]       # (B, N, 3)
    fea = fea_ref[...]      # (B, N, C)

    # ---- sample_point_feature (gaussian weighting), batched over B ----
    # ||q - p||^2 = |q|^2 + |p|^2 - 2 q.p  (cross term on the MXU, no transpose)
    cross = jnp.einsum('btd,bnd->btn', q, pts,
                       preferred_element_type=jnp.float32)           # (B, T, N)
    q_sq = jnp.sum(q * q, axis=-1, keepdims=True)                    # (B, T, 1)
    p_sq = jnp.sum(pts * pts, axis=-1)                               # (B, N)
    d2 = jnp.maximum(q_sq + p_sq[:, None, :] - 2.0 * cross, 0.0)
    dist = jnp.sqrt(d2)
    logit = -((dist + 1e-5) ** 2) / VAR
    # Max-stabilised softmax over N: identical to exp(logit)/sum(exp(logit))
    # but never produces 0/0 for far-away queries.
    m = jnp.max(logit, axis=-1, keepdims=True)
    w = jnp.exp(logit - m)
    w_sum = jnp.sum(w, axis=-1, keepdims=True)                       # (B, T, 1)
    c = jnp.einsum('btn,bnc->btc', w, fea,
                   preferred_element_type=jnp.float32)               # (B, T, C)
    c = c * pl.reciprocal(w_sum)   # exact; approx=True at production sizes

    # ---- shared-weight MLP on the fused (B*T, .) row dimension ----
    q2 = q.reshape(B * T, DIM)
    c2 = c.reshape(B * T, C_DIM)

    wp = misc_ref[0:DIM, :]                 # (3, H)
    bp = misc_ref[DIM, :]                   # (H,)
    net = jnp.dot(q2, wp, preferred_element_type=jnp.float32) + bp[None, :]

    # All five fc_c projections as ONE matmul (bias folded in as the last row).
    wc_all = wc_ref[0:C_DIM, :]             # (C, NB*H)
    bc_all = wc_ref[C_DIM, :]               # (NB*H,)
    c_proj = jnp.dot(c2, wc_all,
                     preferred_element_type=jnp.float32) + bc_all[None, :]

    for i in range(N_BLOCKS):               # small, fixed static unroll
        w0 = wblk_ref[i, 0:HIDDEN, :]                 # (H, H)
        w1 = wblk_ref[i, HIDDEN:2 * HIDDEN, :]        # (H, H)
        b0 = bblk_ref[i, 0, :]
        b1 = bblk_ref[i, 1, :]
        net = net + c_proj[:, i * HIDDEN:(i + 1) * HIDDEN]
        h = jnp.dot(jnp.maximum(net, 0.0), w0,
                    preferred_element_type=jnp.float32) + b0[None, :]
        dx = jnp.dot(jnp.maximum(h, 0.0), w1,
                     preferred_element_type=jnp.float32) + b1[None, :]
        net = net + dx

    # ---- fc_out(relu(net)): H -> 1 as VPU multiply + lane reduce -----------
    wout_row = misc_ref[DIM + 1, :]         # (H,)
    bout = misc_ref[DIM + 2, 0:1]           # (1,)
    out_vec = jnp.sum(jnp.maximum(net, 0.0) * wout_row[None, :], axis=-1) + bout
    out_ref[...] = out_vec[None, :]         # (1, B*T)  lane-dense store


def pack_params(params):
    """Pack the 10 small nn.Linear tensors into 4 VMEM-friendly slabs."""
    wp, bp, wc, bc, w0, b0, w1, b1, wout, bout = params
    # fc_c: fuse all blocks along the output dim; bias is the last row.
    wc_all = jnp.concatenate([wc[i] for i in range(N_BLOCKS)], axis=1)   # (C, NB*H)
    bc_all = jnp.concatenate([bc[i] for i in range(N_BLOCKS)], axis=0)   # (NB*H,)
    wc_slab = jnp.concatenate([wc_all, bc_all[None, :]], axis=0)         # (C+1, NB*H)
    w_blk = jnp.concatenate([w0, w1], axis=1)                            # (NB, 2H, H)
    b_blk = jnp.stack([b0, b1], axis=1)                                  # (NB, 2, H)
    misc = jnp.concatenate([
        wp,                                                   # rows 0..2: fc_p W
        bp.reshape(1, HIDDEN),                                # row 3: fc_p b
        wout.reshape(1, HIDDEN),                              # row 4: fc_out W (row)
        jnp.broadcast_to(bout.reshape(1, 1), (1, HIDDEN)),    # row 5: fc_out b
    ], axis=0)                                                # (6, H)
    return wc_slab, w_blk, b_blk, misc


def local_point_decoder(p, pp, fea, params):
    """p: (B,T,3), pp: (B,N,3), fea: (B,N,C) -> (B,T)"""
    B, T, _ = p.shape
    N = pp.shape[1]
    wc_slab, w_blk, b_blk, misc = pack_params(params)
    out = pl.pallas_call(
        decoder_kernel,
        out_shape=jax.ShapeDtypeStruct((1, B * T), jnp.float32),
        grid_spec=pltpu.PrefetchScalarGridSpec(
            num_scalar_prefetch=0,
            grid=(1,),   # whole (small) batch in one step; grid over query
                         # tiles only becomes worthwhile at production T/N
            in_specs=[
                pl.BlockSpec((B, T, DIM), lambda i: (0, 0, 0)),        # p
                pl.BlockSpec((B, N, DIM), lambda i: (0, 0, 0)),        # pp
                pl.BlockSpec((B, N, C_DIM), lambda i: (0, 0, 0)),      # fea
                pl.BlockSpec((C_DIM + 1, N_BLOCKS * HIDDEN),
                             lambda i: (0, 0)),                        # fused fc_c
                pl.BlockSpec((N_BLOCKS, 2 * HIDDEN, HIDDEN),
                             lambda i: (0, 0, 0)),                     # resnet Ws
                pl.BlockSpec((N_BLOCKS, 2, HIDDEN), lambda i: (0, 0, 0)),  # resnet bs
                pl.BlockSpec((DIM + 3, HIDDEN), lambda i: (0, 0)),     # fc_p / fc_out
            ],
            out_specs=pl.BlockSpec((1, B * T), lambda i: (0, 0)),
        ),
        compiler_params=pltpu.CompilerParams(
            dimension_semantics=("arbitrary",)),
    )(p, pp, fea, wc_slab, w_blk, b_blk, misc)
    return out.reshape(B, T)


def reference(p, pp, fea, params):
    """Pure-JAX transcription of the PyTorch forward (gaussian sample mode)."""
    wp, bp, wc, bc, w0, b0, w1, b1, wout, bout = params
    diff = pp[:, None, :, :] - p[:, :, None, :]                 # (B,T,N,3)
    dist = jnp.sqrt(jnp.sum(diff * diff, axis=3))
    weight = jnp.exp(-((dist + 1e-5) ** 2) / VAR)
    weight = weight / jnp.sum(weight, axis=2, keepdims=True)
    c = weight @ fea                                            # (B,T,C)
    net = p @ wp + bp
    for i in range(N_BLOCKS):
        net = net + c @ wc[i] + bc[i]
        h = jnp.maximum(net, 0.0) @ w0[i] + b0[i]
        dx = jnp.maximum(h, 0.0) @ w1[i] + b1[i]
        net = net + dx
    out = jnp.maximum(net, 0.0) @ wout + bout
    return out[..., 0]


def make_params(key):
    # Deterministic synthetic parameters (NOT matching PyTorch's default init;
    # the original zero-inits fc_1 of each ResnetBlockFC — random values here
    # so the hot path is exercised).
    ks = jax.random.split(key, 10)
    s = 0.1
    wp = s * jax.random.normal(ks[0], (DIM, HIDDEN), jnp.float32)
    bp = s * jax.random.normal(ks[1], (1, HIDDEN), jnp.float32)
    wc = s * jax.random.normal(ks[2], (N_BLOCKS, C_DIM, HIDDEN), jnp.float32)
    bc = s * jax.random.normal(ks[3], (N_BLOCKS, HIDDEN), jnp.float32)
    w0 = s * jax.random.normal(ks[4], (N_BLOCKS, HIDDEN, HIDDEN), jnp.float32)
    b0 = s * jax.random.normal(ks[5], (N_BLOCKS, HIDDEN), jnp.float32)
    w1 = s * jax.random.normal(ks[6], (N_BLOCKS, HIDDEN, HIDDEN), jnp.float32)
    b1 = s * jax.random.normal(ks[7], (N_BLOCKS, HIDDEN), jnp.float32)
    wout = s * jax.random.normal(ks[8], (HIDDEN, 1), jnp.float32)
    bout = s * jax.random.normal(ks[9], (1, 1), jnp.float32)
    return (wp, bp, wc, bc, w0, b0, w1, b1, wout, bout)


if __name__ == "__main__":
    key = jax.random.PRNGKey(0)
    k_p, k_pp, k_fea, k_par = jax.random.split(key, 4)

    B, T, N = 2, 8, 16
    # Points in a bounded volume whose scale matches gaussian_val=0.2, so the
    # faithful (un-stabilised) reference never hits the 0/0 underflow; the
    # kernel itself is robust to any scale via its max-stabilised softmax.
    p = jax.random.uniform(k_p, (B, T, DIM), jnp.float32, minval=-0.5, maxval=0.5)
    pp = jax.random.uniform(k_pp, (B, N, DIM), jnp.float32, minval=-0.5, maxval=0.5)
    fea = jax.random.normal(k_fea, (B, N, C_DIM), jnp.float32)
    params = make_params(k_par)

    out = jax.block_until_ready(local_point_decoder(p, pp, fea, params))
    ref = jax.block_until_ready(reference(p, pp, fea, params))

    assert out.shape == (B, T), out.shape
    assert bool(jnp.all(jnp.isfinite(out))), out
    assert jnp.allclose(out, ref, atol=1e-4, rtol=1e-4), (out, ref)
    print("KERNEL_OK")
</pallas_src>

<mosaic_0001>
module attributes {stable_mosaic.version = 11 : i64} {
  func.func @decoder_kernel(%arg0: i32, %arg1: memref<2x8x3xf32, #tpu.memory_space<vmem>>, %arg2: memref<2x16x3xf32, #tpu.memory_space<vmem>>, %arg3: memref<2x16x32xf32, #tpu.memory_space<vmem>>, %arg4: memref<33x160xf32, #tpu.memory_space<vmem>>, %arg5: memref<5x64x32xf32, #tpu.memory_space<vmem>>, %arg6: memref<5x2x32xf32, #tpu.memory_space<vmem>>, %arg7: memref<6x32xf32, #tpu.memory_space<vmem>>, %arg8: memref<1x16xf32, #tpu.memory_space<vmem>>) attributes {dimension_semantics = [#tpu.dimension_semantics<arbitrary>], iteration_bounds = array<i64: 1>, scalar_prefetch = 0 : i64, scratch_operands = 0 : i64, tpu.core_type = #tpu.core_type<tc>, window_params = [{pipeline_mode = #tpu.pipeline_mode<synchronous>, transform_indices = @transform_0, window_bounds = array<i64: 2, 8, 3>}, {pipeline_mode = #tpu.pipeline_mode<synchronous>, transform_indices = @transform_1, window_bounds = array<i64: 2, 16, 3>}, {pipeline_mode = #tpu.pipeline_mode<synchronous>, transform_indices = @transform_2, window_bounds = array<i64: 2, 16, 32>}, {pipeline_mode = #tpu.pipeline_mode<synchronous>, transform_indices = @transform_3, window_bounds = array<i64: 33, 160>}, {pipeline_mode = #tpu.pipeline_mode<synchronous>, transform_indices = @transform_4, window_bounds = array<i64: 5, 64, 32>}, {pipeline_mode = #tpu.pipeline_mode<synchronous>, transform_indices = @transform_5, window_bounds = array<i64: 5, 2, 32>}, {pipeline_mode = #tpu.pipeline_mode<synchronous>, transform_indices = @transform_6, window_bounds = array<i64: 6, 32>}, {pipeline_mode = #tpu.pipeline_mode<synchronous>, transform_indices = @transform_7, window_bounds = array<i64: 1, 16>}]} {
    %c0 = arith.constant 0 : index
    %c0_0 = arith.constant 0 : index
    %c0_1 = arith.constant 0 : index
    %0 = vector.load %arg1[%c0, %c0_0, %c0_1] : memref<2x8x3xf32, #tpu.memory_space<vmem>>, vector<2x8x3xf32>
    %c0_2 = arith.constant 0 : index
    %c0_3 = arith.constant 0 : index
    %c0_4 = arith.constant 0 : index
    %1 = vector.load %arg2[%c0_2, %c0_3, %c0_4] : memref<2x16x3xf32, #tpu.memory_space<vmem>>, vector<2x16x3xf32>
    %c0_5 = arith.constant 0 : index
    %c0_6 = arith.constant 0 : index
    %c0_7 = arith.constant 0 : index
    %2 = vector.load %arg3[%c0_5, %c0_6, %c0_7] : memref<2x16x32xf32, #tpu.memory_space<vmem>>, vector<2x16x32xf32>
    "tpu.trace_start"() <{level = 10 : i32, message = "btd,bnd->btn"}> : () -> ()
    %cst = arith.constant dense<0.000000e+00> : vector<2x8x16xf32>
    %3 = tpu.matmul %0, %1, %cst {dimension_numbers = #tpu.dot_dimension_numbers<[2], [2], [1], [1], [0, 0, 0, 1, 1, 1], [0], [0]>} : vector<2x8x3xf32>, vector<2x16x3xf32>, vector<2x8x16xf32> -> vector<2x8x16xf32>
    "tpu.trace_stop"() : () -> ()
    %4 = arith.mulf %0, %0 : vector<2x8x3xf32>
    %cst_8 = arith.constant dense<0.000000e+00> : vector<2x8xf32>
    %5 = vector.multi_reduction <add>, %4, %cst_8 [2] : vector<2x8x3xf32> to vector<2x8xf32>
    %6 = vector.shape_cast %5 : vector<2x8xf32> to vector<2x8x1xf32>
    %7 = arith.mulf %1, %1 : vector<2x16x3xf32>
    %cst_9 = arith.constant dense<0.000000e+00> : vector<2x16xf32>
    %8 = vector.multi_reduction <add>, %7, %cst_9 [2] : vector<2x16x3xf32> to vector<2x16xf32>
    %9 = vector.shape_cast %8 : vector<2x16xf32> to vector<2x1x16xf32>
    %10 = vector.broadcast %6 : vector<2x8x1xf32> to vector<2x8x16xf32>
    %11 = vector.broadcast %9 : vector<2x1x16xf32> to vector<2x8x16xf32>
    %12 = arith.addf %10, %11 : vector<2x8x16xf32>
    %cst_10 = arith.constant 2.000000e+00 : f32
    %13 = vector.broadcast %cst_10 : f32 to vector<2x8x16xf32>
    %14 = arith.mulf %13, %3 : vector<2x8x16xf32>
    %15 = arith.subf %12, %14 : vector<2x8x16xf32>
    %cst_11 = arith.constant 0.000000e+00 : f32
    %16 = vector.broadcast %cst_11 : f32 to vector<2x8x16xf32>
    %17 = arith.maximumf %15, %16 : vector<2x8x16xf32>
    %18 = math.sqrt %17 : vector<2x8x16xf32>
    %cst_12 = arith.constant 9.99999974E-6 : f32
    %19 = vector.broadcast %cst_12 : f32 to vector<2x8x16xf32>
    %20 = arith.addf %18, %19 : vector<2x8x16xf32>
    %21 = arith.mulf %20, %20 : vector<2x8x16xf32>
    %cst_13 = arith.constant 0.000000e+00 : f32
    %22 = vector.broadcast %cst_13 : f32 to vector<2x8x16xf32>
    %23 = arith.subf %22, %21 : vector<2x8x16xf32>
    %cst_14 = arith.constant 4.000000e-02 : f32
    %24 = vector.broadcast %cst_14 : f32 to vector<2x8x16xf32>
    %25 = arith.divf %23, %24 : vector<2x8x16xf32>
    %cst_15 = arith.constant dense<0xFF800000> : vector<2x8xf32>
    %26 = vector.multi_reduction <maximumf>, %25, %cst_15 [2] : vector<2x8x16xf32> to vector<2x8xf32>
    %27 = vector.shape_cast %26 : vector<2x8xf32> to vector<2x8x1xf32>
    %28 = vector.broadcast %27 : vector<2x8x1xf32> to vector<2x8x16xf32>
    %29 = arith.subf %25, %28 : vector<2x8x16xf32>
    %30 = math.exp %29 : vector<2x8x16xf32>
    %cst_16 = arith.constant dense<0.000000e+00> : vector<2x8xf32>
    %31 = vector.multi_reduction <add>, %30, %cst_16 [2] : vector<2x8x16xf32> to vector<2x8xf32>
    %32 = vector.shape_cast %31 : vector<2x8xf32> to vector<2x8x1xf32>
    "tpu.trace_start"() <{level = 10 : i32, message = "btn,bnc->btc"}> : () -> ()
    %cst_17 = arith.constant dense<0.000000e+00> : vector<2x8x32xf32>
    %33 = tpu.matmul %30, %2, %cst_17 {dimension_numbers = #tpu.dot_dimension_numbers<[2], [1], [1], [2], [0, 0, 0, 1, 1, 2], [0], [0]>} : vector<2x8x16xf32>, vector<2x16x32xf32>, vector<2x8x32xf32> -> vector<2x8x32xf32>
    "tpu.trace_stop"() : () -> ()
    %34 = tpu.reciprocal %32 : vector<2x8x1xf32> -> vector<2x8x1xf32>
    %35 = vector.broadcast %34 : vector<2x8x1xf32> to vector<2x8x32xf32>
    %36 = arith.mulf %33, %35 : vector<2x8x32xf32>
    %37 = vector.shape_cast %0 : vector<2x8x3xf32> to vector<16x3xf32>
    %38 = vector.shape_cast %36 : vector<2x8x32xf32> to vector<16x32xf32>
    %c0_18 = arith.constant 0 : index
    %c0_19 = arith.constant 0 : index
    %39 = vector.load %arg7[%c0_18, %c0_19] : memref<6x32xf32, #tpu.memory_space<vmem>>, vector<3x32xf32>
    %c3 = arith.constant 3 : index
    %c0_20 = arith.constant 0 : index
    %40 = vector.load %arg7[%c3, %c0_20] : memref<6x32xf32, #tpu.memory_space<vmem>>, vector<1x32xf32>
    %41 = vector.shape_cast %40 : vector<1x32xf32> to vector<32xf32>
    %cst_21 = arith.constant dense<0.000000e+00> : vector<16x32xf32>
    %42 = tpu.matmul %37, %39, %cst_21 {dimension_numbers = #tpu.dot_dimension_numbers<[1], [0], [0], [1], [0, 0, 1, 1], [], []>} : vector<16x3xf32>, vector<3x32xf32>, vector<16x32xf32> -> vector<16x32xf32>
    %43 = vector.shape_cast %41 : vector<32xf32> to vector<1x32xf32>
    %44 = vector.broadcast %43 : vector<1x32xf32> to vector<16x32xf32>
    %45 = arith.addf %42, %44 : vector<16x32xf32>
    %c0_22 = arith.constant 0 : index
    %c0_23 = arith.constant 0 : index
    %46 = vector.load %arg4[%c0_22, %c0_23] : memref<33x160xf32, #tpu.memory_space<vmem>>, vector<32x160xf32>
    %c32 = arith.constant 32 : index
    %c0_24 = arith.constant 0 : index
    %47 = vector.load %arg4[%c32, %c0_24] : memref<33x160xf32, #tpu.memory_space<vmem>>, vector<1x160xf32>
    %48 = vector.shape_cast %47 : vector<1x160xf32> to vector<160xf32>
    %cst_25 = arith.constant dense<0.000000e+00> : vector<16x160xf32>
    %49 = tpu.matmul %38, %46, %cst_25 {dimension_numbers = #tpu.dot_dimension_numbers<[1], [0], [0], [1], [0, 0, 1, 1], [], []>} : vector<16x32xf32>, vector<32x160xf32>, vector<16x160xf32> -> vector<16x160xf32>
    %50 = vector.shape_cast %48 : vector<160xf32> to vector<1x160xf32>
    %51 = vector.broadcast %50 : vector<1x160xf32> to vector<16x160xf32>
    %52 = arith.addf %49, %51 : vector<16x160xf32>
    %c0_26 = arith.constant 0 : index
    %c0_27 = arith.constant 0 : index
    %c0_28 = arith.constant 0 : index
    %53 = vector.load %arg5[%c0_26, %c0_27, %c0_28] : memref<5x64x32xf32, #tpu.memory_space<vmem>>, vector<1x32x32xf32>
    %54 = vector.shape_cast %53 : vector<1x32x32xf32> to vector<32x32xf32>
    %c0_29 = arith.constant 0 : index
    %c32_30 = arith.constant 32 : index
    %c0_31 = arith.constant 0 : index
    %55 = vector.load %arg5[%c0_29, %c32_30, %c0_31] : memref<5x64x32xf32, #tpu.memory_space<vmem>>, vector<1x32x32xf32>
    %56 = vector.shape_cast %55 : vector<1x32x32xf32> to vector<32x32xf32>
    %c0_32 = arith.constant 0 : index
    %c0_33 = arith.constant 0 : index
    %c0_34 = arith.constant 0 : index
    %57 = vector.load %arg6[%c0_32, %c0_33, %c0_34] : memref<5x2x32xf32, #tpu.memory_space<vmem>>, vector<1x1x32xf32>
    %58 = vector.shape_cast %57 : vector<1x1x32xf32> to vector<32xf32>
    %c0_35 = arith.constant 0 : index
    %c1 = arith.constant 1 : index
    %c0_36 = arith.constant 0 : index
    %59 = vector.load %arg6[%c0_35, %c1, %c0_36] : memref<5x2x32xf32, #tpu.memory_space<vmem>>, vector<1x1x32xf32>
    %60 = vector.shape_cast %59 : vector<1x1x32xf32> to vector<32xf32>
    %61 = vector.extract_strided_slice %52 {offsets = [0, 0], sizes = [16, 32], strides = [1, 1]} : vector<16x160xf32> to vector<16x32xf32>
    %62 = arith.addf %45, %61 : vector<16x32xf32>
    %cst_37 = arith.constant 0.000000e+00 : f32
    %63 = vector.broadcast %cst_37 : f32 to vector<16x32xf32>
    %64 = arith.maximumf %62, %63 : vector<16x32xf32>
    %cst_38 = arith.constant dense<0.000000e+00> : vector<16x32xf32>
    %65 = tpu.matmul %64, %54, %cst_38 {dimension_numbers = #tpu.dot_dimension_numbers<[1], [0], [0], [1], [0, 0, 1, 1], [], []>} : vector<16x32xf32>, vector<32x32xf32>, vector<16x32xf32> -> vector<16x32xf32>
    %66 = vector.shape_cast %58 : vector<32xf32> to vector<1x32xf32>
    %67 = vector.broadcast %66 : vector<1x32xf32> to vector<16x32xf32>
    %68 = arith.addf %65, %67 : vector<16x32xf32>
    %cst_39 = arith.constant 0.000000e+00 : f32
    %69 = vector.broadcast %cst_39 : f32 to vector<16x32xf32>
    %70 = arith.maximumf %68, %69 : vector<16x32xf32>
    %cst_40 = arith.constant dense<0.000000e+00> : vector<16x32xf32>
    %71 = tpu.matmul %70, %56, %cst_40 {dimension_numbers = #tpu.dot_dimension_numbers<[1], [0], [0], [1], [0, 0, 1, 1], [], []>} : vector<16x32xf32>, vector<32x32xf32>, vector<16x32xf32> -> vector<16x32xf32>
    %72 = vector.shape_cast %60 : vector<32xf32> to vector<1x32xf32>
    %73 = vector.broadcast %72 : vector<1x32xf32> to vector<16x32xf32>
    %74 = arith.addf %71, %73 : vector<16x32xf32>
    %75 = arith.addf %62, %74 : vector<16x32xf32>
    %c1_41 = arith.constant 1 : index
    %c0_42 = arith.constant 0 : index
    %c0_43 = arith.constant 0 : index
    %76 = vector.load %arg5[%c1_41, %c0_42, %c0_43] : memref<5x64x32xf32, #tpu.memory_space<vmem>>, vector<1x32x32xf32>
    %77 = vector.shape_cast %76 : vector<1x32x32xf32> to vector<32x32xf32>
    %c1_44 = arith.constant 1 : index
    %c32_45 = arith.constant 32 : index
    %c0_46 = arith.constant 0 : index
    %78 = vector.load %arg5[%c1_44, %c32_45, %c0_46] : memref<5x64x32xf32, #tpu.memory_space<vmem>>, vector<1x32x32xf32>
    %79 = vector.shape_cast %78 : vector<1x32x32xf32> to vector<32x32xf32>
    %c1_47 = arith.constant 1 : index
    %c0_48 = arith.constant 0 : index
    %c0_49 = arith.constant 0 : index
    %80 = vector.load %arg6[%c1_47, %c0_48, %c0_49] : memref<5x2x32xf32, #tpu.memory_space<vmem>>, vector<1x1x32xf32>
    %81 = vector.shape_cast %80 : vector<1x1x32xf32> to vector<32xf32>
    %c1_50 = arith.constant 1 : index
    %c1_51 = arith.constant 1 : index
    %c0_52 = arith.constant 0 : index
    %82 = vector.load %arg6[%c1_50, %c1_51, %c0_52] : memref<5x2x32xf32, #tpu.memory_space<vmem>>, vector<1x1x32xf32>
    %83 = vector.shape_cast %82 : vector<1x1x32xf32> to vector<32xf32>
    %84 = vector.extract_strided_slice %52 {offsets = [0, 32], sizes = [16, 32], strides = [1, 1]} : vector<16x160xf32> to vector<16x32xf32>
    %85 = arith.addf %75, %84 : vector<16x32xf32>
    %cst_53 = arith.constant 0.000000e+00 : f32
    %86 = vector.broadcast %cst_53 : f32 to vector<16x32xf32>
    %87 = arith.maximumf %85, %86 : vector<16x32xf32>
    %cst_54 = arith.constant dense<0.000000e+00> : vector<16x32xf32>
    %88 = tpu.matmul %87, %77, %cst_54 {dimension_numbers = #tpu.dot_dimension_numbers<[1], [0], [0], [1], [0, 0, 1, 1], [], []>} : vector<16x32xf32>, vector<32x32xf32>, vector<16x32xf32> -> vector<16x32xf32>
    %89 = vector.shape_cast %81 : vector<32xf32> to vector<1x32xf32>
    %90 = vector.broadcast %89 : vector<1x32xf32> to vector<16x32xf32>
    %91 = arith.addf %88, %90 : vector<16x32xf32>
    %cst_55 = arith.constant 0.000000e+00 : f32
    %92 = vector.broadcast %cst_55 : f32 to vector<16x32xf32>
    %93 = arith.maximumf %91, %92 : vector<16x32xf32>
    %cst_56 = arith.constant dense<0.000000e+00> : vector<16x32xf32>
    %94 = tpu.matmul %93, %79, %cst_56 {dimension_numbers = #tpu.dot_dimension_numbers<[1], [0], [0], [1], [0, 0, 1, 1], [], []>} : vector<16x32xf32>, vector<32x32xf32>, vector<16x32xf32> -> vector<16x32xf32>
    %95 = vector.shape_cast %83 : vector<32xf32> to vector<1x32xf32>
    %96 = vector.broadcast %95 : vector<1x32xf32> to vector<16x32xf32>
    %97 = arith.addf %94, %96 : vector<16x32xf32>
    %98 = arith.addf %85, %97 : vector<16x32xf32>
    %c2 = arith.constant 2 : index
    %c0_57 = arith.constant 0 : index
    %c0_58 = arith.constant 0 : index
    %99 = vector.load %arg5[%c2, %c0_57, %c0_58] : memref<5x64x32xf32, #tpu.memory_space<vmem>>, vector<1x32x32xf32>
    %100 = vector.shape_cast %99 : vector<1x32x32xf32> to vector<32x32xf32>
    %c2_59 = arith.constant 2 : index
    %c32_60 = arith.constant 32 : index
    %c0_61 = arith.constant 0 : index
    %101 = vector.load %arg5[%c2_59, %c32_60, %c0_61] : memref<5x64x32xf32, #tpu.memory_space<vmem>>, vector<1x32x32xf32>
    %102 = vector.shape_cast %101 : vector<1x32x32xf32> to vector<32x32xf32>
    %c2_62 = arith.constant 2 : index
    %c0_63 = arith.constant 0 : index
    %c0_64 = arith.constant 0 : index
    %103 = vector.load %arg6[%c2_62, %c0_63, %c0_64] : memref<5x2x32xf32, #tpu.memory_space<vmem>>, vector<1x1x32xf32>
    %104 = vector.shape_cast %103 : vector<1x1x32xf32> to vector<32xf32>
    %c2_65 = arith.constant 2 : index
    %c1_66 = arith.constant 1 : index
    %c0_67 = arith.constant 0 : index
    %105 = vector.load %arg6[%c2_65, %c1_66, %c0_67] : memref<5x2x32xf32, #tpu.memory_space<vmem>>, vector<1x1x32xf32>
    %106 = vector.shape_cast %105 : vector<1x1x32xf32> to vector<32xf32>
    %107 = vector.extract_strided_slice %52 {offsets = [0, 64], sizes = [16, 32], strides = [1, 1]} : vector<16x160xf32> to vector<16x32xf32>
    %108 = arith.addf %98, %107 : vector<16x32xf32>
    %cst_68 = arith.constant 0.000000e+00 : f32
    %109 = vector.broadcast %cst_68 : f32 to vector<16x32xf32>
    %110 = arith.maximumf %108, %109 : vector<16x32xf32>
    %cst_69 = arith.constant dense<0.000000e+00> : vector<16x32xf32>
    %111 = tpu.matmul %110, %100, %cst_69 {dimension_numbers = #tpu.dot_dimension_numbers<[1], [0], [0], [1], [0, 0, 1, 1], [], []>} : vector<16x32xf32>, vector<32x32xf32>, vector<16x32xf32> -> vector<16x32xf32>
    %112 = vector.shape_cast %104 : vector<32xf32> to vector<1x32xf32>
    %113 = vector.broadcast %112 : vector<1x32xf32> to vector<16x32xf32>
    %114 = arith.addf %111, %113 : vector<16x32xf32>
    %cst_70 = arith.constant 0.000000e+00 : f32
    %115 = vector.broadcast %cst_70 : f32 to vector<16x32xf32>
    %116 = arith.maximumf %114, %115 : vector<16x32xf32>
    %cst_71 = arith.constant dense<0.000000e+00> : vector<16x32xf32>
    %117 = tpu.matmul %116, %102, %cst_71 {dimension_numbers = #tpu.dot_dimension_numbers<[1], [0], [0], [1], [0, 0, 1, 1], [], []>} : vector<16x32xf32>, vector<32x32xf32>, vector<16x32xf32> -> vector<16x32xf32>
    %118 = vector.shape_cast %106 : vector<32xf32> to vector<1x32xf32>
    %119 = vector.broadcast %118 : vector<1x32xf32> to vector<16x32xf32>
    %120 = arith.addf %117, %119 : vector<16x32xf32>
    %121 = arith.addf %108, %120 : vector<16x32xf32>
    %c3_72 = arith.constant 3 : index
    %c0_73 = arith.constant 0 : index
    %c0_74 = arith.constant 0 : index
    %122 = vector.load %arg5[%c3_72, %c0_73, %c0_74] : memref<5x64x32xf32, #tpu.memory_space<vmem>>, vector<1x32x32xf32>
    %123 = vector.shape_cast %122 : vector<1x32x32xf32> to vector<32x32xf32>
    %c3_75 = arith.constant 3 : index
    %c32_76 = arith.constant 32 : index
    %c0_77 = arith.constant 0 : index
    %124 = vector.load %arg5[%c3_75, %c32_76, %c0_77] : memref<5x64x32xf32, #tpu.memory_space<vmem>>, vector<1x32x32xf32>
    %125 = vector.shape_cast %124 : vector<1x32x32xf32> to vector<32x32xf32>
    %c3_78 = arith.constant 3 : index
    %c0_79 = arith.constant 0 : index
    %c0_80 = arith.constant 0 : index
    %126 = vector.load %arg6[%c3_78, %c0_79, %c0_80] : memref<5x2x32xf32, #tpu.memory_space<vmem>>, vector<1x1x32xf32>
    %127 = vector.shape_cast %126 : vector<1x1x32xf32> to vector<32xf32>
    %c3_81 = arith.constant 3 : index
    %c1_82 = arith.constant 1 : index
    %c0_83 = arith.constant 0 : index
    %128 = vector.load %arg6[%c3_81, %c1_82, %c0_83] : memref<5x2x32xf32, #tpu.memory_space<vmem>>, vector<1x1x32xf32>
    %129 = vector.shape_cast %128 : vector<1x1x32xf32> to vector<32xf32>
    %130 = vector.extract_strided_slice %52 {offsets = [0, 96], sizes = [16, 32], strides = [1, 1]} : vector<16x160xf32> to vector<16x32xf32>
    %131 = arith.addf %121, %130 : vector<16x32xf32>
    %cst_84 = arith.constant 0.000000e+00 : f32
    %132 = vector.broadcast %cst_84 : f32 to vector<16x32xf32>
    %133 = arith.maximumf %131, %132 : vector<16x32xf32>
    %cst_85 = arith.constant dense<0.000000e+00> : vector<16x32xf32>
    %134 = tpu.matmul %133, %123, %cst_85 {dimension_numbers = #tpu.dot_dimension_numbers<[1], [0], [0], [1], [0, 0, 1, 1], [], []>} : vector<16x32xf32>, vector<32x32xf32>, vector<16x32xf32> -> vector<16x32xf32>
    %135 = vector.shape_cast %127 : vector<32xf32> to vector<1x32xf32>
    %136 = vector.broadcast %135 : vector<1x32xf32> to vector<16x32xf32>
    %137 = arith.addf %134, %136 : vector<16x32xf32>
    %cst_86 = arith.constant 0.000000e+00 : f32
    %138 = vector.broadcast %cst_86 : f32 to vector<16x32xf32>
    %139 = arith.maximumf %137, %138 : vector<16x32xf32>
    %cst_87 = arith.constant dense<0.000000e+00> : vector<16x32xf32>
    %140 = tpu.matmul %139, %125, %cst_87 {dimension_numbers = #tpu.dot_dimension_numbers<[1], [0], [0], [1], [0, 0, 1, 1], [], []>} : vector<16x32xf32>, vector<32x32xf32>, vector<16x32xf32> -> vector<16x32xf32>
    %141 = vector.shape_cast %129 : vector<32xf32> to vector<1x32xf32>
    %142 = vector.broadcast %141 : vector<1x32xf32> to vector<16x32xf32>
    %143 = arith.addf %140, %142 : vector<16x32xf32>
    %144 = arith.addf %131, %143 : vector<16x32xf32>
    %c4 = arith.constant 4 : index
    %c0_88 = arith.constant 0 : index
    %c0_89 = arith.constant 0 : index
    %145 = vector.load %arg5[%c4, %c0_88, %c0_89] : memref<5x64x32xf32, #tpu.memory_space<vmem>>, vector<1x32x32xf32>
    %146 = vector.shape_cast %145 : vector<1x32x32xf32> to vector<32x32xf32>
    %c4_90 = arith.constant 4 : index
    %c32_91 = arith.constant 32 : index
    %c0_92 = arith.constant 0 : index
    %147 = vector.load %arg5[%c4_90, %c32_91, %c0_92] : memref<5x64x32xf32, #tpu.memory_space<vmem>>, vector<1x32x32xf32>
    %148 = vector.shape_cast %147 : vector<1x32x32xf32> to vector<32x32xf32>
    %c4_93 = arith.constant 4 : index
    %c0_94 = arith.constant 0 : index
    %c0_95 = arith.constant 0 : index
    %149 = vector.load %arg6[%c4_93, %c0_94, %c0_95] : memref<5x2x32xf32, #tpu.memory_space<vmem>>, vector<1x1x32xf32>
    %150 = vector.shape_cast %149 : vector<1x1x32xf32> to vector<32xf32>
    %c4_96 = arith.constant 4 : index
    %c1_97 = arith.constant 1 : index
    %c0_98 = arith.constant 0 : index
    %151 = vector.load %arg6[%c4_96, %c1_97, %c0_98] : memref<5x2x32xf32, #tpu.memory_space<vmem>>, vector<1x1x32xf32>
    %152 = vector.shape_cast %151 : vector<1x1x32xf32> to vector<32xf32>
    %153 = vector.extract_strided_slice %52 {offsets = [0, 128], sizes = [16, 32], strides = [1, 1]} : vector<16x160xf32> to vector<16x32xf32>
    %154 = arith.addf %144, %153 : vector<16x32xf32>
    %cst_99 = arith.constant 0.000000e+00 : f32
    %155 = vector.broadcast %cst_99 : f32 to vector<16x32xf32>
    %156 = arith.maximumf %154, %155 : vector<16x32xf32>
    %cst_100 = arith.constant dense<0.000000e+00> : vector<16x32xf32>
    %157 = tpu.matmul %156, %146, %cst_100 {dimension_numbers = #tpu.dot_dimension_numbers<[1], [0], [0], [1], [0, 0, 1, 1], [], []>} : vector<16x32xf32>, vector<32x32xf32>, vector<16x32xf32> -> vector<16x32xf32>
    %158 = vector.shape_cast %150 : vector<32xf32> to vector<1x32xf32>
    %159 = vector.broadcast %158 : vector<1x32xf32> to vector<16x32xf32>
    %160 = arith.addf %157, %159 : vector<16x32xf32>
    %cst_101 = arith.constant 0.000000e+00 : f32
    %161 = vector.broadcast %cst_101 : f32 to vector<16x32xf32>
    %162 = arith.maximumf %160, %161 : vector<16x32xf32>
    %cst_102 = arith.constant dense<0.000000e+00> : vector<16x32xf32>
    %163 = tpu.matmul %162, %148, %cst_102 {dimension_numbers = #tpu.dot_dimension_numbers<[1], [0], [0], [1], [0, 0, 1, 1], [], []>} : vector<16x32xf32>, vector<32x32xf32>, vector<16x32xf32> -> vector<16x32xf32>
    %164 = vector.shape_cast %152 : vector<32xf32> to vector<1x32xf32>
    %165 = vector.broadcast %164 : vector<1x32xf32> to vector<16x32xf32>
    %166 = arith.addf %163, %165 : vector<16x32xf32>
    %167 = arith.addf %154, %166 : vector<16x32xf32>
    %c4_103 = arith.constant 4 : index
    %c0_104 = arith.constant 0 : index
    %168 = vector.load %arg7[%c4_103, %c0_104] : memref<6x32xf32, #tpu.memory_space<vmem>>, vector<1x32xf32>
    %169 = vector.shape_cast %168 : vector<1x32xf32> to vector<32xf32>
    %c5 = arith.constant 5 : index
    %c0_105 = arith.constant 0 : index
    %170 = vector.load %arg7[%c5, %c0_105] : memref<6x32xf32, #tpu.memory_space<vmem>>, vector<1x1xf32>
    %171 = vector.shape_cast %170 : vector<1x1xf32> to vector<1xf32>
    %cst_106 = arith.constant 0.000000e+00 : f32
    %172 = vector.broadcast %cst_106 : f32 to vector<16x32xf32>
    %173 = arith.maximumf %167, %172 : vector<16x32xf32>
    %174 = vector.shape_cast %169 : vector<32xf32> to vector<1x32xf32>
    %175 = vector.broadcast %174 : vector<1x32xf32> to vector<16x32xf32>
    %176 = arith.mulf %173, %175 : vector<16x32xf32>
    %cst_107 = arith.constant dense<0.000000e+00> : vector<16xf32>
    %177 = vector.multi_reduction <add>, %176, %cst_107 [1] : vector<16x32xf32> to vector<16xf32>
    %178 = vector.broadcast %171 : vector<1xf32> to vector<16xf32>
    %179 = arith.addf %177, %178 : vector<16xf32>
    %180 = vector.shape_cast %179 : vector<16xf32> to vector<1x16xf32>
    %c0_108 = arith.constant 0 : index
    %c0_109 = arith.constant 0 : index
    %181 = vector.load %arg8[%c0_108, %c0_109] : memref<1x16xf32, #tpu.memory_space<vmem>>, vector<1x16xf32>
    tpu.vector_store %arg8[%c0_108, %c0_109], %180 {strides = array<i32>} : memref<1x16xf32, #tpu.memory_space<vmem>>, vector<1x16xf32>,
    return
  }
  func.func @transform_0(%arg0: i32) -> (i32, i32, i32) {
    %c0_i32 = arith.constant 0 : i32
    %c0_i32_0 = arith.constant 0 : i32
    %c0_i32_1 = arith.constant 0 : i32
    %c0_i32_2 = arith.constant 0 : i32
    return %c0_i32, %c0_i32_0, %c0_i32_1 : i32, i32, i32
  }
  func.func @transform_1(%arg0: i32) -> (i32, i32, i32) {
    %c0_i32 = arith.constant 0 : i32
    %c0_i32_0 = arith.constant 0 : i32
    %c0_i32_1 = arith.constant 0 : i32
    %c0_i32_2 = arith.constant 0 : i32
    return %c0_i32, %c0_i32_0, %c0_i32_1 : i32, i32, i32
  }
  func.func @transform_2(%arg0: i32) -> (i32, i32, i32) {
    %c0_i32 = arith.constant 0 : i32
    %c0_i32_0 = arith.constant 0 : i32
    %c0_i32_1 = arith.constant 0 : i32
    %c0_i32_2 = arith.constant 0 : i32
    return %c0_i32, %c0_i32_0, %c0_i32_1 : i32, i32, i32
  }
  func.func @transform_3(%arg0: i32) -> (i32, i32) {
    %c0_i32 = arith.constant 0 : i32
    %c0_i32_0 = arith.constant 0 : i32
    %c0_i32_1 = arith.constant 0 : i32
    return %c0_i32, %c0_i32_0 : i32, i32
  }
  func.func @transform_4(%arg0: i32) -> (i32, i32, i32) {
    %c0_i32 = arith.constant 0 : i32
    %c0_i32_0 = arith.constant 0 : i32
    %c0_i32_1 = arith.constant 0 : i32
    %c0_i32_2 = arith.constant 0 : i32
    return %c0_i32, %c0_i32_0, %c0_i32_1 : i32, i32, i32
  }
  func.func @transform_5(%arg0: i32) -> (i32, i32, i32) {
    %c0_i32 = arith.constant 0 : i32
    %c0_i32_0 = arith.constant 0 : i32
    %c0_i32_1 = arith.constant 0 : i32
    %c0_i32_2 = arith.constant 0 : i32
    return %c0_i32, %c0_i32_0, %c0_i32_1 : i32, i32, i32
  }
  func.func @transform_6(%arg0: i32) -> (i32, i32) {
    %c0_i32 = arith.constant 0 : i32
    %c0_i32_0 = arith.constant 0 : i32
    %c0_i32_1 = arith.constant 0 : i32
    return %c0_i32, %c0_i32_0 : i32, i32
  }
  func.func @transform_7(%arg0: i32) -> (i32, i32) {
    %c0_i32 = arith.constant 0 : i32
    %c0_i32_0 = arith.constant 0 : i32
    %c0_i32_1 = arith.constant 0 : i32
    return %c0_i32, %c0_i32_0 : i32, i32
  }
}

</mosaic_0001>

<llo_original>
// kernel: tpu_custom_call.1
$region0: #{tpu_custom_call.1}
  #allocation0 [shape = 'u32[]', space=smem, size = 0x4, offset = 0x4, fixed_abs, tag = 'smem constant byte address 0x4 - core index']
  #allocation1 [shape = 'u32[144,128]{1,0:T(1,128)}', space=vmem, size = 0x12000, scoped, tag = 'internal scratch']
  %s0 = inlined_call_operand.vmem [shape: f32[2,8,3], index: 0, kind: input, shape index: {}]
  %s1 = inlined_call_operand.vmem [shape: f32[2,16,3], index: 1, kind: input, shape index: {}]
  %s2 = inlined_call_operand.vmem [shape: f32[2,16,32], index: 2, kind: input, shape index: {}]
  %s3 = inlined_call_operand.vmem [shape: f32[33,160], index: 3, kind: input, shape index: {}]
  %s4 = inlined_call_operand.vmem [shape: f32[5,64,32], index: 4, kind: input, shape index: {}]
  %s5 = inlined_call_operand.vmem [shape: f32[5,2,32], index: 5, kind: input, shape index: {}]
  %s6 = inlined_call_operand.vmem [shape: f32[6,32], index: 6, kind: input, shape index: {}]
  %s7 = inlined_call_operand.hbm [shape: f32[1,16], index: 7, kind: output, shape index: {}]
  %s8 = sld [smem:[#allocation0]]
  $region38: #{tpu_custom_call.1} parent=0
    _
  %s10 = ssub.s32 1, %s8
  %s11 = scalar_select 0, %s10, %s8
  $region1: #{tpu_custom_call.1} parent=0
    #allocation2 [shape = 'u8[512]{0}', space=vmem, size = 0x400, scoped, tag = 'output window, operand 0, single buffered']
    #allocation3 [shape = 's32[1]{0}', space=sflag, size = 0x4, scoped, tag = 'scoped memory for tpu_custom_call.1']
    %12 = vsyncpa [#allocation3], 0
    // Predicated region
    $region2: #{tpu_custom_call.1} parent=1 // pred_check
      _
    $region3: #{tpu_custom_call.1} parent=1 // pred_check_branch
      %14 = sbr.rel (0) target = $region5
    $region4: #{tpu_custom_call.1} parent=1 // pred_region
      _
    $region5: #{tpu_custom_call.1} parent=1 // pred_fallthru
      _
    // Predicated region
    $region6: #{tpu_custom_call.1} parent=1 // pred_check
      _
    $region7: #{tpu_custom_call.1} parent=1 // pred_check_branch
      %16 = sbr.rel (0) target = $region9
    $region8: #{tpu_custom_call.1} parent=1 // pred_region
      _
    $region9: #{tpu_custom_call.1} parent=1 // pred_fallthru
      _
    // Predicated region
    $region10: #{tpu_custom_call.1} parent=1 // pred_check
      _
    $region11: #{tpu_custom_call.1} parent=1 // pred_check_branch
      %18 = sbr.rel (0) target = $region13
    $region12: #{tpu_custom_call.1} parent=1 // pred_region
      _
    $region13: #{tpu_custom_call.1} parent=1 // pred_fallthru
      _
    // Predicated region
    $region14: #{tpu_custom_call.1} parent=1 // pred_check
      _
    $region15: #{tpu_custom_call.1} parent=1 // pred_check_branch
      %20 = sbr.rel (0) target = $region17
    $region16: #{tpu_custom_call.1} parent=1 // pred_region
      _
    $region17: #{tpu_custom_call.1} parent=1 // pred_fallthru
      _
    // Predicated region
    $region18: #{tpu_custom_call.1} parent=1 // pred_check
      _
    $region19: #{tpu_custom_call.1} parent=1 // pred_check_branch
      %22 = sbr.rel (0) target = $region21
    $region20: #{tpu_custom_call.1} parent=1 // pred_region
      _
    $region21: #{tpu_custom_call.1} parent=1 // pred_fallthru
      _
    // Predicated region
    $region22: #{tpu_custom_call.1} parent=1 // pred_check
      _
    $region23: #{tpu_custom_call.1} parent=1 // pred_check_branch
      %24 = sbr.rel (0) target = $region25
    $region24: #{tpu_custom_call.1} parent=1 // pred_region
      _
    $region25: #{tpu_custom_call.1} parent=1 // pred_fallthru
      _
    // Predicated region
    $region26: #{tpu_custom_call.1} parent=1 // pred_check
      _
    $region27: #{tpu_custom_call.1} parent=1 // pred_check_branch
      %26 = sbr.rel (0) target = $region29
    $region28: #{tpu_custom_call.1} parent=1 // pred_region
      _
    $region29: #{tpu_custom_call.1} parent=1 // pred_fallthru
      _
    %v27 = vld [vmem:[%s0] sm:$0xff]
    %v28 = vld [vmem:[%s0 + $0x8] sm:$0xff]
    %v29 = vld [vmem:[%s1] sm:$0xff]
    %v30 = vld [vmem:[%s1 + $0x8] sm:$0xff]
    %v31 = vld [vmem:[%s1 + $0x10] sm:$0xff]
    %v32 = vld [vmem:[%s1 + $0x18] sm:$0xff]
    %v33 = vld [vmem:[%s2] sm:$0xff]
    %v34 = vld [vmem:[%s2 + $0x8] sm:$0xff]
    %v35 = vld [vmem:[%s2 + $0x10] sm:$0xff]
    %v36 = vld [vmem:[%s2 + $0x18] sm:$0xff]
    %vm37 = vcmask 23552
    %v39 = vsel %vm37, %v27, 0
    %v42 = vsel %vm37, %v29, 0
    %v45 = vsel %vm37, %v30, 0
    %47 = vmatprep.subr.mxu0 0.0
    %48 = vmatpush1.xpose.msra.mxu0 %v42
    %49 = vmatprep.subr.mxu0 0.0
    %50 = vmatpush1.xpose.msra.mxu0 %v45
    %51 = vmatprep.subr.mxu0 0.0
    %52 = vmatpush1.xpose.msra.mxu0 0.0
    %53 = vmatprep.subr.mxu0 0.0
    %54 = vmatpush1.xpose.msra.mxu0 0.0
    %55 = vmatprep.subr.mxu0 0.0
    %56 = vmatpush1.xpose.msra.mxu0 0.0
    %57 = vmatprep.subr.mxu0 0.0
    %58 = vmatpush1.xpose.msra.mxu0 0.0
    %59 = vmatprep.subr.mxu0 0.0
    %60 = vmatpush1.xpose.msra.mxu0 0.0
    %61 = vmatprep.subr.mxu0 0.0
    %62 = vmatpush1.xpose.msra.mxu0 0.0
    %63 = vmatprep.subr.mxu0 0.0
    %64 = vmatpush1.xpose.msra.mxu0 0.0
    %65 = vmatprep.subr.mxu0 0.0
    %66 = vmatpush1.xpose.msra.mxu0 0.0
    %67 = vmatprep.subr.mxu0 0.0
    %68 = vmatpush1.xpose.msra.mxu0 0.0
    %69 = vmatprep.subr.mxu0 0.0
    %70 = vmatpush1.xpose.msra.mxu0 0.0
    %71 = vmatprep.subr.mxu0 0.0
    %72 = vmatpush1.xpose.msra.mxu0 0.0
    %73 = vmatprep.subr.mxu0 0.0
    %74 = vmatpush1.xpose.msra.mxu0 0.0
    %75 = vmatprep.subr.mxu0 0.0
    %76 = vmatpush1.xpose.msra.mxu0 0.0
    %77 = vmatprep.subr.mxu0 0.0
    %78 = vmatpush1.xpose.msra.mxu0 0.0
    %79 = vmatprep.subr.mxu0 0.0
    %80 = vmatpush1.xpose.msra.mxu0 0.0
    %81 = vmatprep.subr.mxu0 0.0
    %82 = vmatpush1.xpose.msra.mxu0 0.0
    %83 = vmatprep.subr.mxu0 0.0
    %84 = vmatpush1.xpose.msra.mxu0 0.0
    %85 = vmatprep.subr.mxu0 0.0
    %86 = vmatpush1.xpose.msra.mxu0 0.0
    %87 = vmatprep.subr.mxu0 0.0
    %88 = vmatpush1.xpose.msra.mxu0 0.0
    %89 = vmatprep.subr.mxu0 0.0
    %90 = vmatpush1.xpose.msra.mxu0 0.0
    %91 = vmatprep.subr.mxu0 0.0
    %92 = vmatpush1.xpose.msra.mxu0 0.0
    %93 = vmatprep.subr.mxu0 0.0
    %94 = vmatpush1.xpose.msra.mxu0 0.0
    %95 = vmatprep.subr.mxu0 0.0
    %96 = vmatpush1.xpose.msra.mxu0 0.0
    %97 = vmatprep.subr.mxu0 0.0
    %98 = vmatpush1.xpose.msra.mxu0 0.0
    %99 = vmatprep.subr.mxu0 0.0
    %100 = vmatpush1.xpose.msra.mxu0 0.0
    %101 = vmatprep.subr.mxu0 0.0
    %102 = vmatpush1.xpose.msra.mxu0 0.0
    %103 = vmatprep.subr.mxu0 0.0
    %104 = vmatpush1.xpose.msra.mxu0 0.0
    %105 = vmatprep.subr.mxu0 0.0
    %106 = vmatpush1.xpose.msra.mxu0 0.0
    %107 = vmatprep.subr.mxu0 0.0
    %108 = vmatpush1.xpose.msra.mxu0 0.0
    %109 = vmatprep.subr.mxu0 0.0
    %110 = vmatpush1.xpose.msra.mxu0 0.0
    %111 = vmatprep.mubr.f32.mxu0 0.0
    %112 = vmatmul.mubr.f32.gmra.mrb[0].mxu0 %v39
    %v113 = vpop.f32.mrb[0].mxu0
    %v114 = vadd.f32 0.0, %v113
    %v115 = vpop.f32.mrb[0].mxu0
    %116 = vdwg.mxu0
    %v118 = vsel %vm37, %v28, 0
    %v121 = vsel %vm37, %v31, 0
    %v124 = vsel %vm37, %v32, 0
    %126 = vmatprep.subr.mxu0 0.0
    %127 = vmatpush1.xpose.msra.mxu0 %v121
    %128 = vmatprep.subr.mxu0 0.0
    %129 = vmatpush1.xpose.msra.mxu0 %v124
    %130 = vmatprep.subr.mxu0 0.0
    %131 = vmatpush1.xpose.msra.mxu0 0.0
    %132 = vmatprep.subr.mxu0 0.0
    %133 = vmatpush1.xpose.msra.mxu0 0.0
    %134 = vmatprep.subr.mxu0 0.0
    %135 = vmatpush1.xpose.msra.mxu0 0.0
    %136 = vmatprep.subr.mxu0 0.0
    %137 = vmatpush1.xpose.msra.mxu0 0.0
    %138 = vmatprep.subr.mxu0 0.0
    %139 = vmatpush1.xpose.msra.mxu0 0.0
    %140 = vmatprep.subr.mxu0 0.0
    %141 = vmatpush1.xpose.msra.mxu0 0.0
    %142 = vmatprep.subr.mxu0 0.0
    %143 = vmatpush1.xpose.msra.mxu0 0.0
    %144 = vmatprep.subr.mxu0 0.0
    %145 = vmatpush1.xpose.msra.mxu0 0.0
    %146 = vmatprep.subr.mxu0 0.0
    %147 = vmatpush1.xpose.msra.mxu0 0.0
    %148 = vmatprep.subr.mxu0 0.0
    %149 = vmatpush1.xpose.msra.mxu0 0.0
    %150 = vmatprep.subr.mxu0 0.0
    %151 = vmatpush1.xpose.msra.mxu0 0.0
    %152 = vmatprep.subr.mxu0 0.0
    %153 = vmatpush1.xpose.msra.mxu0 0.0
    %154 = vmatprep.subr.mxu0 0.0
    %155 = vmatpush1.xpose.msra.mxu0 0.0
    %156 = vmatprep.subr.mxu0 0.0
    %157 = vmatpush1.xpose.msra.mxu0 0.0
    %158 = vmatprep.subr.mxu0 0.0
    %159 = vmatpush1.xpose.msra.mxu0 0.0
    %160 = vmatprep.subr.mxu0 0.0
    %161 = vmatpush1.xpose.msra.mxu0 0.0
    %162 = vmatprep.subr.mxu0 0.0
    %163 = vmatpush1.xpose.msra.mxu0 0.0
    %164 = vmatprep.subr.mxu0 0.0
    %165 = vmatpush1.xpose.msra.mxu0 0.0
    %166 = vmatprep.subr.mxu0 0.0
    %167 = vmatpush1.xpose.msra.mxu0 0.0
    %168 = vmatprep.subr.mxu0 0.0
    %169 = vmatpush1.xpose.msra.mxu0 0.0
    %170 = vmatprep.subr.mxu0 0.0
    %171 = vmatpush1.xpose.msra.mxu0 0.0
    %172 = vmatprep.subr.mxu0 0.0
    %173 = vmatpush1.xpose.msra.mxu0 0.0
    %174 = vmatprep.subr.mxu0 0.0
    %175 = vmatpush1.xpose.msra.mxu0 0.0
    %176 = vmatprep.subr.mxu0 0.0
    %177 = vmatpush1.xpose.msra.mxu0 0.0
    %178 = vmatprep.subr.mxu0 0.0
    %179 = vmatpush1.xpose.msra.mxu0 0.0
    %180 = vmatprep.subr.mxu0 0.0
    %181 = vmatpush1.xpose.msra.mxu0 0.0
    %182 = vmatprep.subr.mxu0 0.0
    %183 = vmatpush1.xpose.msra.mxu0 0.0
    %184 = vmatprep.subr.mxu0 0.0
    %185 = vmatpush1.xpose.msra.mxu0 0.0
    %186 = vmatprep.subr.mxu0 0.0
    %187 = vmatpush1.xpose.msra.mxu0 0.0
    %188 = vmatprep.subr.mxu0 0.0
    %189 = vmatpush1.xpose.msra.mxu0 0.0
    %190 = vmatprep.mubr.f32.mxu0 0.0
    %191 = vmatmul.mubr.f32.gmra.mrb[0].mxu0 %v118
    %v192 = vpop.f32.mrb[0].mxu0
    %v193 = vadd.f32 0.0, %v192
    %v194 = vpop.f32.mrb[0].mxu0
    %195 = vdwg.mxu0
    %v196 = vmul.f32 %v27, %v27
    %v197 = vmul.f32 %v28, %v28
    %v198 = vsel %vm37, %v196, 0.0
    %199 = vadd.xlane.f32.xlu0 %v198
    %v200 = vpop.xlane.xlu0 %199
    %v201 = vsel %vm37, %v197, 0.0
    %202 = vadd.xlane.f32.xlu0 %v201
    %v203 = vpop.xlane.xlu0 %202
    %v204 = vmul.f32 %v29, %v29
    %v205 = vmul.f32 %v30, %v30
    %v206 = vmul.f32 %v31, %v31
    %v207 = vmul.f32 %v32, %v32
    %v208 = vsel %vm37, %v204, 0.0
    %209 = vadd.xlane.f32.xlu0 %v208
    %v210 = vpop.xlane.xlu0 %209
    %v211 = vsel %vm37, %v205, 0.0
    %212 = vadd.xlane.f32.xlu0 %v211
    %v213 = vpop.xlane.xlu0 %212
    %v214 = vsel %vm37, %v206, 0.0
    %215 = vadd.xlane.f32.xlu0 %v214
    %v216 = vpop.xlane.xlu0 %215
    %v217 = vsel %vm37, %v207, 0.0
    %218 = vadd.xlane.f32.xlu0 %v217
    %v219 = vpop.xlane.xlu0 %218
    %v224 = vlaneseq
    %v225 = vand.u32 %v224, 127
    %v226 = vlaneseq
    %v227 = vshrl.u32 %v226, 7
    %v228 = vsub.s32 %v225, %v227
    %v229 = vrot.slane %v210, %v228
    %v230 = vadd.s32 %v225, 4294967288
    %v231 = vlaneseq
    %v232 = vshrl.u32 %v231, 7
    %v233 = vsub.s32 %v230, %v232
    %v234 = vrot.slane %v213, %v233
    %vm235 = vcmask 130112
    %v236 = vsel %vm235, %v234, %v229
    %v237 = vlaneseq
    %v238 = vshrl.u32 %v237, 7
    %v239 = vsub.s32 %v225, %v238
    %v240 = vrot.slane %v216, %v239
    %v241 = vlaneseq
    %v242 = vshrl.u32 %v241, 7
    %v243 = vsub.s32 %v230, %v242
    %v244 = vrot.slane %v219, %v243
    %v245 = vsel %vm235, %v244, %v240
    %vm246 = vcmask 1042434
    %v247 = vsel %vm246, %v236, %v236
    %vm248 = vcmask 1043459
    %v249 = vsel %vm248, %v236, %v247
    %vm250 = vcmask 1044484
    %v251 = vsel %vm250, %v236, %v249
    %vm252 = vcmask 1045509
    %v253 = vsel %vm252, %v236, %v251
    %vm254 = vcmask 1046534
    %v255 = vsel %vm254, %v236, %v253
    %vm256 = vcmask 1047559
    %v257 = vsel %vm256, %v236, %v255
    %v258 = vsel %vm246, %v245, %v245
    %v259 = vsel %vm248, %v245, %v258
    %v260 = vsel %vm250, %v245, %v259
    %v261 = vsel %vm252, %v245, %v260
    %v262 = vsel %vm254, %v245, %v261
    %v263 = vsel %vm256, %v245, %v262
    %v266 = vadd.f32 %v200, %v257
    %v267 = vadd.f32 %v203, %v263
    %v268 = vmul.f32 %v114, 2.0
    %v269 = vmul.f32 %v193, 2.0
    %v270 = vsub.f32 %v266, %v268
    %v271 = vsub.f32 %v267, %v269
    %v272 = vmax.f32 %v270, 0.0
    %v273 = vmax.f32 %v271, 0.0
    %v274 = vrsqrt.pop %v272
    %v275 = vmul.f32 %v272, %v274
    %vm276 = vcmp.eq.f32.partialorder %v272, inf
    %v277 = vsel %vm276, %v272, %v275
    %vm278 = vcmp.eq.f32.partialorder %v272, 0.0
    %v279 = vand.u32 %v272, 2147483648
    %v280 = vsel %vm278, %v279, %v277
    %v281 = vrsqrt.pop %v273
    %v282 = vmul.f32 %v273, %v281
    %vm283 = vcmp.eq.f32.partialorder %v273, inf
    %v284 = vsel %vm283, %v273, %v282
    %vm285 = vcmp.eq.f32.partialorder %v273, 0.0
    %v286 = vand.u32 %v273, 2147483648
    %v287 = vsel %vm285, %v286, %v284
    %v288 = vadd.f32 %v280, 1e-05
    %v289 = vadd.f32 %v287, 1e-05
    %v290 = vmul.f32 %v288, %v288
    %v291 = vmul.f32 %v289, %v289
    %v292 = vsub.f32 0.0, %v290
    %v293 = vsub.f32 0.0, %v291
    %v294 = vrcp.pop 0.04
    %v295 = vmul.f32 %v292, %v294
    %v296 = vmul.f32 %v293, %v294
    %vm297 = vcmask 130048
    %v298 = vsel %vm297, %v295, -inf
    %299 = vmax.xlane.f32.xlu0 %v298
    %v300 = vpop.xlane.xlu0 %299
    %v301 = vsel %vm297, %v296, -inf
    %302 = vmax.xlane.f32.xlu0 %v301
    %v303 = vpop.xlane.xlu0 %302
    %v304 = vsub.f32 %v295, %v300
    %v305 = vsub.f32 %v296, %v303
    %v306 = vmul.f32 %v304, 1.442695
    %v307 = vpow.pop %v306
    %v308 = vmul.f32 %v305, 1.442695
    %v309 = vpow.pop %v308
    %v310 = vsel %vm297, %v307, 0.0
    %311 = vadd.xlane.f32.xlu0 %v310
    %v312 = vpop.xlane.xlu0 %311
    %v313 = vsel %vm297, %v309, 0.0
    %314 = vadd.xlane.f32.xlu0 %v313
    %v315 = vpop.xlane.xlu0 %314
    %v317 = vsel %vm297, %v307, 0
    %319 = vmatprep.subr.mxu0 0.0
    %320 = vmatpush1.msra.mxu0 %v33
    %321 = vmatprep.subr.mxu0 0.0
    %322 = vmatpush1.msra.mxu0 %v34
    %323 = vmatprep.subr.mxu0 0.0
    %324 = vmatpush1.msra.mxu0 0.0
    %325 = vmatprep.subr.mxu0 0.0
    %326 = vmatpush1.msra.mxu0 0.0
    %327 = vmatprep.subr.mxu0 0.0
    %328 = vmatpush1.msra.mxu0 0.0
    %329 = vmatprep.subr.mxu0 0.0
    %330 = vmatpush1.msra.mxu0 0.0
    %331 = vmatprep.subr.mxu0 0.0
    %332 = vmatpush1.msra.mxu0 0.0
    %333 = vmatprep.subr.mxu0 0.0
    %334 = vmatpush1.msra.mxu0 0.0
    %335 = vmatprep.subr.mxu0 0.0
    %336 = vmatpush1.msra.mxu0 0.0
    %337 = vmatprep.subr.mxu0 0.0
    %338 = vmatpush1.msra.mxu0 0.0
    %339 = vmatprep.subr.mxu0 0.0
    %340 = vmatpush1.msra.mxu0 0.0
    %341 = vmatprep.subr.mxu0 0.0
    %342 = vmatpush1.msra.mxu0 0.0
    %343 = vmatprep.subr.mxu0 0.0
    %344 = vmatpush1.msra.mxu0 0.0
    %345 = vmatprep.subr.mxu0 0.0
    %346 = vmatpush1.msra.mxu0 0.0
    %347 = vmatprep.subr.mxu0 0.0
    %348 = vmatpush1.msra.mxu0 0.0
    %349 = vmatprep.subr.mxu0 0.0
    %350 = vmatpush1.msra.mxu0 0.0
    %351 = vmatprep.subr.mxu0 0.0
    %352 = vmatpush1.msra.mxu0 0.0
    %353 = vmatprep.subr.mxu0 0.0
    %354 = vmatpush1.msra.mxu0 0.0
    %355 = vmatprep.subr.mxu0 0.0
    %356 = vmatpush1.msra.mxu0 0.0
    %357 = vmatprep.subr.mxu0 0.0
    %358 = vmatpush1.msra.mxu0 0.0
    %359 = vmatprep.subr.mxu0 0.0
    %360 = vmatpush1.msra.mxu0 0.0
    %361 = vmatprep.subr.mxu0 0.0
    %362 = vmatpush1.msra.mxu0 0.0
    %363 = vmatprep.subr.mxu0 0.0
    %364 = vmatpush1.msra.mxu0 0.0
    %365 = vmatprep.subr.mxu0 0.0
    %366 = vmatpush1.msra.mxu0 0.0
    %367 = vmatprep.subr.mxu0 0.0
    %368 = vmatpush1.msra.mxu0 0.0
    %369 = vmatprep.subr.mxu0 0.0
    %370 = vmatpush1.msra.mxu0 0.0
    %371 = vmatprep.subr.mxu0 0.0
    %372 = vmatpush1.msra.mxu0 0.0
    %373 = vmatprep.subr.mxu0 0.0
    %374 = vmatpush1.msra.mxu0 0.0
    %375 = vmatprep.subr.mxu0 0.0
    %376 = vmatpush1.msra.mxu0 0.0
    %377 = vmatprep.subr.mxu0 0.0
    %378 = vmatpush1.msra.mxu0 0.0
    %379 = vmatprep.subr.mxu0 0.0
    %380 = vmatpush1.msra.mxu0 0.0
    %381 = vmatprep.subr.mxu0 0.0
    %382 = vmatpush1.msra.mxu0 0.0
    %383 = vmatprep.mubr.f32.mxu0 0.0
    %384 = vmatmul.mubr.f32.gmra.mrb[0].mxu0 %v317
    %v385 = vpop.f32.mrb[0].mxu0
    %v386 = vadd.f32 0.0, %v385
    %v387 = vpop.f32.mrb[0].mxu0
    %388 = vdwg.mxu0
    %v390 = vsel %vm297, %v309, 0
    %392 = vmatprep.subr.mxu0 0.0
    %393 = vmatpush1.msra.mxu0 %v35
    %394 = vmatprep.subr.mxu0 0.0
    %395 = vmatpush1.msra.mxu0 %v36
    %396 = vmatprep.subr.mxu0 0.0
    %397 = vmatpush1.msra.mxu0 0.0
    %398 = vmatprep.subr.mxu0 0.0
    %399 = vmatpush1.msra.mxu0 0.0
    %400 = vmatprep.subr.mxu0 0.0
    %401 = vmatpush1.msra.mxu0 0.0
    %402 = vmatprep.subr.mxu0 0.0
    %403 = vmatpush1.msra.mxu0 0.0
    %404 = vmatprep.subr.mxu0 0.0
    %405 = vmatpush1.msra.mxu0 0.0
    %406 = vmatprep.subr.mxu0 0.0
    %407 = vmatpush1.msra.mxu0 0.0
    %408 = vmatprep.subr.mxu0 0.0
    %409 = vmatpush1.msra.mxu0 0.0
    %410 = vmatprep.subr.mxu0 0.0
    %411 = vmatpush1.msra.mxu0 0.0
    %412 = vmatprep.subr.mxu0 0.0
    %413 = vmatpush1.msra.mxu0 0.0
    %414 = vmatprep.subr.mxu0 0.0
    %415 = vmatpush1.msra.mxu0 0.0
    %416 = vmatprep.subr.mxu0 0.0
    %417 = vmatpush1.msra.mxu0 0.0
    %418 = vmatprep.subr.mxu0 0.0
    %419 = vmatpush1.msra.mxu0 0.0
    %420 = vmatprep.subr.mxu0 0.0
    %421 = vmatpush1.msra.mxu0 0.0
    %422 = vmatprep.subr.mxu0 0.0
    %423 = vmatpush1.msra.mxu0 0.0
    %424 = vmatprep.subr.mxu0 0.0
    %425 = vmatpush1.msra.mxu0 0.0
    %426 = vmatprep.subr.mxu0 0.0
    %427 = vmatpush1.msra.mxu0 0.0
    %428 = vmatprep.subr.mxu0 0.0
    %429 = vmatpush1.msra.mxu0 0.0
    %430 = vmatprep.subr.mxu0 0.0
    %431 = vmatpush1.msra.mxu0 0.0
    %432 = vmatprep.subr.mxu0 0.0
    %433 = vmatpush1.msra.mxu0 0.0
    %434 = vmatprep.subr.mxu0 0.0
    %435 = vmatpush1.msra.mxu0 0.0
    %436 = vmatprep.subr.mxu0 0.0
    %437 = vmatpush1.msra.mxu0 0.0
    %438 = vmatprep.subr.mxu0 0.0
    %439 = vmatpush1.msra.mxu0 0.0
    %440 = vmatprep.subr.mxu0 0.0
    %441 = vmatpush1.msra.mxu0 0.0
    %442 = vmatprep.subr.mxu0 0.0
    %443 = vmatpush1.msra.mxu0 0.0
    %444 = vmatprep.subr.mxu0 0.0
    %445 = vmatpush1.msra.mxu0 0.0
    %446 = vmatprep.subr.mxu0 0.0
    %447 = vmatpush1.msra.mxu0 0.0
    %448 = vmatprep.subr.mxu0 0.0
    %449 = vmatpush1.msra.mxu0 0.0
    %450 = vmatprep.subr.mxu0 0.0
    %451 = vmatpush1.msra.mxu0 0.0
    %452 = vmatprep.subr.mxu0 0.0
    %453 = vmatpush1.msra.mxu0 0.0
    %454 = vmatprep.subr.mxu0 0.0
    %455 = vmatpush1.msra.mxu0 0.0
    %456 = vmatprep.mubr.f32.mxu0 0.0
    %457 = vmatmul.mubr.f32.gmra.mrb[0].mxu0 %v390
    %v458 = vpop.f32.mrb[0].mxu0
    %v459 = vadd.f32 0.0, %v458
    %v460 = vpop.f32.mrb[0].mxu0
    %461 = vdwg.mxu0
    %v462 = vrcp.pop %v312
    %v463 = vrcp.pop %v315
    %v464 = vmul.f32 %v386, %v462
    %v465 = vmul.f32 %v459, %v463
    %v466 = vld [vmem:[%s6] sm:$0x7]
    %v467 = vld [vmem:[%s6 + $0x3] sm:$0x1]
    %v468 = vlaneseq
    %v469 = vshrl.u32 %v468, 7
    %v470 = vsub.s32 0, %v469
    %v471 = vrot.slane %v467, %v470
    %vm472 = vcmask 1042432
    %v474 = vsel %vm472, %v466, 0
    %476 = vmatprep.subr.mxu0 0.0
    %477 = vmatpush1.msra.mxu0 %v474
    %478 = vmatprep.subr.mxu0 0.0
    %479 = vmatpush1.msra.mxu0 0.0
    %480 = vmatprep.subr.mxu0 0.0
    %481 = vmatpush1.msra.mxu0 0.0
    %482 = vmatprep.subr.mxu0 0.0
    %483 = vmatpush1.msra.mxu0 0.0
    %484 = vmatprep.subr.mxu0 0.0
    %485 = vmatpush1.msra.mxu0 0.0
    %486 = vmatprep.subr.mxu0 0.0
    %487 = vmatpush1.msra.mxu0 0.0
    %488 = vmatprep.subr.mxu0 0.0
    %489 = vmatpush1.msra.mxu0 0.0
    %490 = vmatprep.subr.mxu0 0.0
    %491 = vmatpush1.msra.mxu0 0.0
    %492 = vmatprep.subr.mxu0 0.0
    %493 = vmatpush1.msra.mxu0 0.0
    %494 = vmatprep.subr.mxu0 0.0
    %495 = vmatpush1.msra.mxu0 0.0
    %496 = vmatprep.subr.mxu0 0.0
    %497 = vmatpush1.msra.mxu0 0.0
    %498 = vmatprep.subr.mxu0 0.0
    %499 = vmatpush1.msra.mxu0 0.0
    %500 = vmatprep.subr.mxu0 0.0
    %501 = vmatpush1.msra.mxu0 0.0
    %502 = vmatprep.subr.mxu0 0.0
    %503 = vmatpush1.msra.mxu0 0.0
    %504 = vmatprep.subr.mxu0 0.0
    %505 = vmatpush1.msra.mxu0 0.0
    %506 = vmatprep.subr.mxu0 0.0
    %507 = vmatpush1.msra.mxu0 0.0
    %508 = vmatprep.subr.mxu0 0.0
    %509 = vmatpush1.msra.mxu0 0.0
    %510 = vmatprep.subr.mxu0 0.0
    %511 = vmatpush1.msra.mxu0 0.0
    %512 = vmatprep.subr.mxu0 0.0
    %513 = vmatpush1.msra.mxu0 0.0
    %514 = vmatprep.subr.mxu0 0.0
    %515 = vmatpush1.msra.mxu0 0.0
    %516 = vmatprep.subr.mxu0 0.0
    %517 = vmatpush1.msra.mxu0 0.0
    %518 = vmatprep.subr.mxu0 0.0
    %519 = vmatpush1.msra.mxu0 0.0
    %520 = vmatprep.subr.mxu0 0.0
    %521 = vmatpush1.msra.mxu0 0.0
    %522 = vmatprep.subr.mxu0 0.0
    %523 = vmatpush1.msra.mxu0 0.0
    %524 = vmatprep.subr.mxu0 0.0
    %525 = vmatpush1.msra.mxu0 0.0
    %526 = vmatprep.subr.mxu0 0.0
    %527 = vmatpush1.msra.mxu0 0.0
    %528 = vmatprep.subr.mxu0 0.0
    %529 = vmatpush1.msra.mxu0 0.0
    %530 = vmatprep.subr.mxu0 0.0
    %531 = vmatpush1.msra.mxu0 0.0
    %532 = vmatprep.subr.mxu0 0.0
    %533 = vmatpush1.msra.mxu0 0.0
    %534 = vmatprep.subr.mxu0 0.0
    %535 = vmatpush1.msra.mxu0 0.0
    %536 = vmatprep.subr.mxu0 0.0
    %537 = vmatpush1.msra.mxu0 0.0
    %538 = vmatprep.subr.mxu0 0.0
    %539 = vmatpush1.msra.mxu0 0.0
    %540 = vmatprep.mubr.f32.mxu0 0.0
    %541 = vmatmul.mubr.f32.gmra.mrb[0].mxu0 %v39
    %v542 = vpop.f32.mrb[0].mxu0
    %v543 = vadd.f32 %v471, %v542
    %v544 = vpop.f32.mrb[0].mxu0
    %545 = vmatprep.mubr.f32.mxu0 0.0
    %546 = vmatmul.mubr.f32.gmra.mrb[0].mxu0 %v118
    %v547 = vpop.f32.mrb[0].mxu0
    %v548 = vadd.f32 %v471, %v547
    %v549 = vpop.f32.mrb[0].mxu0
    %550 = vdwg.mxu0
    %v551 = vld [vmem:[%s3] sm:$0xff]
    %v552 = vld [vmem:[%s3 + $0x8] sm:$0xff]
    %v553 = vld [vmem:[%s3 + $0x10] sm:$0xff]
    %v554 = vld [vmem:[%s3 + $0x18] sm:$0xff]
    %v555 = vld [vmem:[%s3 + $0x20] sm:$0xff]
    %v556 = vld [vmem:[%s3 + $0x28] sm:$0xff]
    %v557 = vld [vmem:[%s3 + $0x30] sm:$0xff]
    %v558 = vld [vmem:[%s3 + $0x38] sm:$0xff]
    %s559 = scalar_lea.vmem %s3, 64
    %v560 = vld [vmem:[%s559] ss:$8 sm:$0x3]
    %v562 = vlaneseq
    %v563 = vshrl.u32 %v562, 7
    %v564 = vsub.s32 0, %v563
    %v565 = vrot.slane %v560, %v564
    %v566 = vlaneseq
    %v567 = vshrl.u32 %v566, 7
    %v568 = vsub.s32 1, %v567
    %v569 = vrot.slane %v560, %v568
    %vm572 = vcmask 261120
    %v574 = vsel %vm572, %v464, 0
    %v577 = vsel %vm572, %v465, 0
    %579 = vmatprep.subr.mxu0 %v552
    %580 = vmatpush1.msra.mxu0 %v551
    %581 = vmatprep.subr.mxu0 %v554
    %582 = vmatpush1.msra.mxu0 %v553
    %583 = vmatprep.subr.mxu0 %v556
    %584 = vmatpush1.msra.mxu0 %v555
    %585 = vmatprep.subr.mxu0 %v558
    %586 = vmatpush1.msra.mxu0 %v557
    %587 = vmatprep.subr.mxu0 0.0
    %588 = vmatpush1.msra.mxu0 0.0
    %589 = vmatprep.subr.mxu0 0.0
    %590 = vmatpush1.msra.mxu0 0.0
    %591 = vmatprep.subr.mxu0 0.0
    %592 = vmatpush1.msra.mxu0 0.0
    %593 = vmatprep.subr.mxu0 0.0
    %594 = vmatpush1.msra.mxu0 0.0
    %595 = vmatprep.subr.mxu0 0.0
    %596 = vmatpush1.msra.mxu0 0.0
    %597 = vmatprep.subr.mxu0 0.0
    %598 = vmatpush1.msra.mxu0 0.0
    %599 = vmatprep.subr.mxu0 0.0
    %600 = vmatpush1.msra.mxu0 0.0
    %601 = vmatprep.subr.mxu0 0.0
    %602 = vmatpush1.msra.mxu0 0.0
    %603 = vmatprep.subr.mxu0 0.0
    %604 = vmatpush1.msra.mxu0 0.0
    %605 = vmatprep.subr.mxu0 0.0
    %606 = vmatpush1.msra.mxu0 0.0
    %607 = vmatprep.subr.mxu0 0.0
    %608 = vmatpush1.msra.mxu0 0.0
    %609 = vmatprep.subr.mxu0 0.0
    %610 = vmatpush1.msra.mxu0 0.0
    %611 = vmatprep.subr.mxu0 0.0
    %612 = vmatpush1.msra.mxu0 0.0
    %613 = vmatprep.subr.mxu0 0.0
    %614 = vmatpush1.msra.mxu0 0.0
    %615 = vmatprep.subr.mxu0 0.0
    %616 = vmatpush1.msra.mxu0 0.0
    %617 = vmatprep.subr.mxu0 0.0
    %618 = vmatpush1.msra.mxu0 0.0
    %619 = vmatprep.subr.mxu0 0.0
    %620 = vmatpush1.msra.mxu0 0.0
    %621 = vmatprep.subr.mxu0 0.0
    %622 = vmatpush1.msra.mxu0 0.0
    %623 = vmatprep.subr.mxu0 0.0
    %624 = vmatpush1.msra.mxu0 0.0
    %625 = vmatprep.subr.mxu0 0.0
    %626 = vmatpush1.msra.mxu0 0.0
    %627 = vmatprep.subr.mxu0 0.0
    %628 = vmatpush1.msra.mxu0 0.0
    %629 = vmatprep.subr.mxu0 0.0
    %630 = vmatpush1.msra.mxu0 0.0
    %631 = vmatprep.subr.mxu0 0.0
    %632 = vmatpush1.msra.mxu0 0.0
    %633 = vmatprep.subr.mxu0 0.0
    %634 = vmatpush1.msra.mxu0 0.0
    %635 = vmatprep.subr.mxu0 0.0
    %636 = vmatpush1.msra.mxu0 0.0
    %637 = vmatprep.subr.mxu0 0.0
    %638 = vmatpush1.msra.mxu0 0.0
    %639 = vmatprep.subr.mxu0 0.0
    %640 = vmatpush1.msra.mxu0 0.0
    %641 = vmatprep.subr.mxu0 0.0
    %642 = vmatpush1.msra.mxu0 0.0
    %643 = vmatprep.mubr.f32.mxu0 0.0
    %644 = vmatmul.mubr.f32.gmra.mrb[0].mxu0 %v574
    %v645 = vpop.f32.mrb[0].mxu0
    %v646 = vadd.f32 %v565, %v645
    %v647 = vpop.f32.mrb[0].mxu0
    %v648 = vadd.f32 %v569, %v647
    %649 = vmatprep.mubr.f32.mxu0 0.0
    %650 = vmatmul.mubr.f32.gmra.mrb[0].mxu0 %v577
    %v651 = vpop.f32.mrb[0].mxu0
    %v652 = vadd.f32 %v565, %v651
    %v653 = vpop.f32.mrb[0].mxu0
    %v654 = vadd.f32 %v569, %v653
    %655 = vdwg.mxu0
    %v656 = vld [vmem:[%s4] sm:$0xff]
    %v657 = vld [vmem:[%s4 + $0x8] sm:$0xff]
    %v658 = vld [vmem:[%s4 + $0x10] sm:$0xff]
    %v659 = vld [vmem:[%s4 + $0x18] sm:$0xff]
    %v660 = vld [vmem:[%s4 + $0x20] sm:$0xff]
    %v661 = vld [vmem:[%s4 + $0x28] sm:$0xff]
    %v662 = vld [vmem:[%s4 + $0x30] sm:$0xff]
    %v663 = vld [vmem:[%s4 + $0x38] sm:$0xff]
    %v664 = vld [vmem:[%s5] sm:$0x1]
    %v665 = vld [vmem:[%s5 + $0x1] sm:$0x1]
    %v666 = vadd.f32 %v543, %v646
    %v667 = vadd.f32 %v548, %v652
    %v668 = vmax.f32 %v666, 0.0
    %v669 = vmax.f32 %v667, 0.0
    %v670 = vlaneseq
    %v671 = vshrl.u32 %v670, 7
    %v672 = vsub.s32 0, %v671
    %v673 = vrot.slane %v664, %v672
    %v675 = vsel %vm572, %v668, 0
    %v678 = vsel %vm572, %v669, 0
    %680 = vmatprep.subr.mxu0 0.0
    %681 = vmatpush1.msra.mxu0 %v656
    %682 = vmatprep.subr.mxu0 0.0
    %683 = vmatpush1.msra.mxu0 %v657
    %684 = vmatprep.subr.mxu0 0.0
    %685 = vmatpush1.msra.mxu0 %v658
    %686 = vmatprep.subr.mxu0 0.0
    %687 = vmatpush1.msra.mxu0 %v659
    %688 = vmatprep.subr.mxu0 0.0
    %689 = vmatpush1.msra.mxu0 0.0
    %690 = vmatprep.subr.mxu0 0.0
    %691 = vmatpush1.msra.mxu0 0.0
    %692 = vmatprep.subr.mxu0 0.0
    %693 = vmatpush1.msra.mxu0 0.0
    %694 = vmatprep.subr.mxu0 0.0
    %695 = vmatpush1.msra.mxu0 0.0
    %696 = vmatprep.subr.mxu0 0.0
    %697 = vmatpush1.msra.mxu0 0.0
    %698 = vmatprep.subr.mxu0 0.0
    %699 = vmatpush1.msra.mxu0 0.0
    %700 = vmatprep.subr.mxu0 0.0
    %701 = vmatpush1.msra.mxu0 0.0
    %702 = vmatprep.subr.mxu0 0.0
    %703 = vmatpush1.msra.mxu0 0.0
    %704 = vmatprep.subr.mxu0 0.0
    %705 = vmatpush1.msra.mxu0 0.0
    %706 = vmatprep.subr.mxu0 0.0
    %707 = vmatpush1.msra.mxu0 0.0
    %708 = vmatprep.subr.mxu0 0.0
    %709 = vmatpush1.msra.mxu0 0.0
    %710 = vmatprep.subr.mxu0 0.0
    %711 = vmatpush1.msra.mxu0 0.0
    %712 = vmatprep.subr.mxu0 0.0
    %713 = vmatpush1.msra.mxu0 0.0
    %714 = vmatprep.subr.mxu0 0.0
    %715 = vmatpush1.msra.mxu0 0.0
    %716 = vmatprep.subr.mxu0 0.0
    %717 = vmatpush1.msra.mxu0 0.0
    %718 = vmatprep.subr.mxu0 0.0
    %719 = vmatpush1.msra.mxu0 0.0
    %720 = vmatprep.subr.mxu0 0.0
    %721 = vmatpush1.msra.mxu0 0.0
    %722 = vmatprep.subr.mxu0 0.0
    %723 = vmatpush1.msra.mxu0 0.0
    %724 = vmatprep.subr.mxu0 0.0
    %725 = vmatpush1.msra.mxu0 0.0
    %726 = vmatprep.subr.mxu0 0.0
    %727 = vmatpush1.msra.mxu0 0.0
    %728 = vmatprep.subr.mxu0 0.0
    %729 = vmatpush1.msra.mxu0 0.0
    %730 = vmatprep.subr.mxu0 0.0
    %731 = vmatpush1.msra.mxu0 0.0
    %732 = vmatprep.subr.mxu0 0.0
    %733 = vmatpush1.msra.mxu0 0.0
    %734 = vmatprep.subr.mxu0 0.0
    %735 = vmatpush1.msra.mxu0 0.0
    %736 = vmatprep.subr.mxu0 0.0
    %737 = vmatpush1.msra.mxu0 0.0
    %738 = vmatprep.subr.mxu0 0.0
    %739 = vmatpush1.msra.mxu0 0.0
    %740 = vmatprep.subr.mxu0 0.0
    %741 = vmatpush1.msra.mxu0 0.0
    %742 = vmatprep.subr.mxu0 0.0
    %743 = vmatpush1.msra.mxu0 0.0
    %744 = vmatprep.mubr.f32.mxu0 0.0
    %745 = vmatmul.mubr.f32.gmra.mrb[0].mxu0 %v675
    %v746 = vpop.f32.mrb[0].mxu0
    %v747 = vadd.f32 %v673, %v746
    %v748 = vpop.f32.mrb[0].mxu0
    %749 = vmatprep.mubr.f32.mxu0 0.0
    %750 = vmatmul.mubr.f32.gmra.mrb[0].mxu0 %v678
    %v751 = vpop.f32.mrb[0].mxu0
    %v752 = vadd.f32 %v673, %v751
    %v753 = vpop.f32.mrb[0].mxu0
    %754 = vdwg.mxu0
    %v755 = vmax.f32 %v747, 0.0
    %v756 = vmax.f32 %v752, 0.0
    %v757 = vlaneseq
    %v758 = vshrl.u32 %v757, 7
    %v759 = vsub.s32 0, %v758
    %v760 = vrot.slane %v665, %v759
    %v762 = vsel %vm572, %v755, 0
    %v765 = vsel %vm572, %v756, 0
    %767 = vmatprep.subr.mxu0 0.0
    %768 = vmatpush1.msra.mxu0 %v660
    %769 = vmatprep.subr.mxu0 0.0
    %770 = vmatpush1.msra.mxu0 %v661
    %771 = vmatprep.subr.mxu0 0.0
    %772 = vmatpush1.msra.mxu0 %v662
    %773 = vmatprep.subr.mxu0 0.0
    %774 = vmatpush1.msra.mxu0 %v663
    %775 = vmatprep.subr.mxu0 0.0
    %776 = vmatpush1.msra.mxu0 0.0
    %777 = vmatprep.subr.mxu0 0.0
    %778 = vmatpush1.msra.mxu0 0.0
    %779 = vmatprep.subr.mxu0 0.0
    %780 = vmatpush1.msra.mxu0 0.0
    %781 = vmatprep.subr.mxu0 0.0
    %782 = vmatpush1.msra.mxu0 0.0
    %783 = vmatprep.subr.mxu0 0.0
    %784 = vmatpush1.msra.mxu0 0.0
    %785 = vmatprep.subr.mxu0 0.0
    %786 = vmatpush1.msra.mxu0 0.0
    %787 = vmatprep.subr.mxu0 0.0
    %788 = vmatpush1.msra.mxu0 0.0
    %789 = vmatprep.subr.mxu0 0.0
    %790 = vmatpush1.msra.mxu0 0.0
    %791 = vmatprep.subr.mxu0 0.0
    %792 = vmatpush1.msra.mxu0 0.0
    %793 = vmatprep.subr.mxu0 0.0
    %794 = vmatpush1.msra.mxu0 0.0
    %795 = vmatprep.subr.mxu0 0.0
    %796 = vmatpush1.msra.mxu0 0.0
    %797 = vmatprep.subr.mxu0 0.0
    %798 = vmatpush1.msra.mxu0 0.0
    %799 = vmatprep.subr.mxu0 0.0
    %800 = vmatpush1.msra.mxu0 0.0
    %801 = vmatprep.subr.mxu0 0.0
    %802 = vmatpush1.msra.mxu0 0.0
    %803 = vmatprep.subr.mxu0 0.0
    %804 = vmatpush1.msra.mxu0 0.0
    %805 = vmatprep.subr.mxu0 0.0
    %806 = vmatpush1.msra.mxu0 0.0
    %807 = vmatprep.subr.mxu0 0.0
    %808 = vmatpush1.msra.mxu0 0.0
    %809 = vmatprep.subr.mxu0 0.0
    %810 = vmatpush1.msra.mxu0 0.0
    %811 = vmatprep.subr.mxu0 0.0
    %812 = vmatpush1.msra.mxu0 0.0
    %813 = vmatprep.subr.mxu0 0.0
    %814 = vmatpush1.msra.mxu0 0.0
    %815 = vmatprep.subr.mxu0 0.0
    %816 = vmatpush1.msra.mxu0 0.0
    %817 = vmatprep.subr.mxu0 0.0
    %818 = vmatpush1.msra.mxu0 0.0
    %819 = vmatprep.subr.mxu0 0.0
    %820 = vmatpush1.msra.mxu0 0.0
    %821 = vmatprep.subr.mxu0 0.0
    %822 = vmatpush1.msra.mxu0 0.0
    %823 = vmatprep.subr.mxu0 0.0
    %824 = vmatpush1.msra.mxu0 0.0
    %825 = vmatprep.subr.mxu0 0.0
    %826 = vmatpush1.msra.mxu0 0.0
    %827 = vmatprep.subr.mxu0 0.0
    %828 = vmatpush1.msra.mxu0 0.0
    %829 = vmatprep.subr.mxu0 0.0
    %830 = vmatpush1.msra.mxu0 0.0
    %831 = vmatprep.mubr.f32.mxu0 0.0
    %832 = vmatmul.mubr.f32.gmra.mrb[0].mxu0 %v762
    %v833 = vpop.f32.mrb[0].mxu0
    %v834 = vadd.f32 %v760, %v833
    %v835 = vpop.f32.mrb[0].mxu0
    %836 = vmatprep.mubr.f32.mxu0 0.0
    %837 = vmatmul.mubr.f32.gmra.mrb[0].mxu0 %v765
    %v838 = vpop.f32.mrb[0].mxu0
    %v839 = vadd.f32 %v760, %v838
    %v840 = vpop.f32.mrb[0].mxu0
    %841 = vdwg.mxu0
    %v842 = vadd.f32 %v666, %v834
    %v843 = vadd.f32 %v667, %v839
    %s844 = scalar_lea.vmem %s4, 64
    %v845 = vld [vmem:[%s844] sm:$0xff]
    %v846 = vld [vmem:[%s844 + $0x8] sm:$0xff]
    %v847 = vld [vmem:[%s844 + $0x10] sm:$0xff]
    %v848 = vld [vmem:[%s844 + $0x18] sm:$0xff]
    %v849 = vld [vmem:[%s844 + $0x20] sm:$0xff]
    %v850 = vld [vmem:[%s844 + $0x28] sm:$0xff]
    %v851 = vld [vmem:[%s844 + $0x30] sm:$0xff]
    %v852 = vld [vmem:[%s844 + $0x38] sm:$0xff]
    %s853 = scalar_lea.vmem %s5, 2
    %v854 = vld [vmem:[%s853] sm:$0x1]
    %v855 = vld [vmem:[%s853 + $0x1] sm:$0x1]
    %858 = vrot.lane.b32.xlu0 %v646, 96
    %v859 = vpop.permute.xlu0 %858
    %860 = vrot.lane.b32.xlu0 %v652, 96
    %v861 = vpop.permute.xlu0 %860
    %v864 = vadd.f32 %v842, %v859
    %v865 = vadd.f32 %v843, %v861
    %v866 = vmax.f32 %v864, 0.0
    %v867 = vmax.f32 %v865, 0.0
    %v868 = vlaneseq
    %v869 = vshrl.u32 %v868, 7
    %v870 = vsub.s32 0, %v869
    %v871 = vrot.slane %v854, %v870
    %v873 = vsel %vm572, %v866, 0
    %v876 = vsel %vm572, %v867, 0
    %878 = vmatprep.subr.mxu0 0.0
    %879 = vmatpush1.msra.mxu0 %v845
    %880 = vmatprep.subr.mxu0 0.0
    %881 = vmatpush1.msra.mxu0 %v846
    %882 = vmatprep.subr.mxu0 0.0
    %883 = vmatpush1.msra.mxu0 %v847
    %884 = vmatprep.subr.mxu0 0.0
    %885 = vmatpush1.msra.mxu0 %v848
    %886 = vmatprep.subr.mxu0 0.0
    %887 = vmatpush1.msra.mxu0 0.0
    %888 = vmatprep.subr.mxu0 0.0
    %889 = vmatpush1.msra.mxu0 0.0
    %890 = vmatprep.subr.mxu0 0.0
    %891 = vmatpush1.msra.mxu0 0.0
    %892 = vmatprep.subr.mxu0 0.0
    %893 = vmatpush1.msra.mxu0 0.0
    %894 = vmatprep.subr.mxu0 0.0
    %895 = vmatpush1.msra.mxu0 0.0
    %896 = vmatprep.subr.mxu0 0.0
    %897 = vmatpush1.msra.mxu0 0.0
    %898 = vmatprep.subr.mxu0 0.0
    %899 = vmatpush1.msra.mxu0 0.0
    %900 = vmatprep.subr.mxu0 0.0
    %901 = vmatpush1.msra.mxu0 0.0
    %902 = vmatprep.subr.mxu0 0.0
    %903 = vmatpush1.msra.mxu0 0.0
    %904 = vmatprep.subr.mxu0 0.0
    %905 = vmatpush1.msra.mxu0 0.0
    %906 = vmatprep.subr.mxu0 0.0
    %907 = vmatpush1.msra.mxu0 0.0
    %908 = vmatprep.subr.mxu0 0.0
    %909 = vmatpush1.msra.mxu0 0.0
    %910 = vmatprep.subr.mxu0 0.0
    %911 = vmatpush1.msra.mxu0 0.0
    %912 = vmatprep.subr.mxu0 0.0
    %913 = vmatpush1.msra.mxu0 0.0
    %914 = vmatprep.subr.mxu0 0.0
    %915 = vmatpush1.msra.mxu0 0.0
    %916 = vmatprep.subr.mxu0 0.0
    %917 = vmatpush1.msra.mxu0 0.0
    %918 = vmatprep.subr.mxu0 0.0
    %919 = vmatpush1.msra.mxu0 0.0
    %920 = vmatprep.subr.mxu0 0.0
    %921 = vmatpush1.msra.mxu0 0.0
    %922 = vmatprep.subr.mxu0 0.0
    %923 = vmatpush1.msra.mxu0 0.0
    %924 = vmatprep.subr.mxu0 0.0
    %925 = vmatpush1.msra.mxu0 0.0
    %926 = vmatprep.subr.mxu0 0.0
    %927 = vmatpush1.msra.mxu0 0.0
    %928 = vmatprep.subr.mxu0 0.0
    %929 = vmatpush1.msra.mxu0 0.0
    %930 = vmatprep.subr.mxu0 0.0
    %931 = vmatpush1.msra.mxu0 0.0
    %932 = vmatprep.subr.mxu0 0.0
    %933 = vmatpush1.msra.mxu0 0.0
    %934 = vmatprep.subr.mxu0 0.0
    %935 = vmatpush1.msra.mxu0 0.0
    %936 = vmatprep.subr.mxu0 0.0
    %937 = vmatpush1.msra.mxu0 0.0
    %938 = vmatprep.subr.mxu0 0.0
    %939 = vmatpush1.msra.mxu0 0.0
    %940 = vmatprep.subr.mxu0 0.0
    %941 = vmatpush1.msra.mxu0 0.0
    %942 = vmatprep.mubr.f32.mxu0 0.0
    %943 = vmatmul.mubr.f32.gmra.mrb[0].mxu0 %v873
    %v944 = vpop.f32.mrb[0].mxu0
    %v945 = vadd.f32 %v871, %v944
    %v946 = vpop.f32.mrb[0].mxu0
    %947 = vmatprep.mubr.f32.mxu0 0.0
    %948 = vmatmul.mubr.f32.gmra.mrb[0].mxu0 %v876
    %v949 = vpop.f32.mrb[0].mxu0
    %v950 = vadd.f32 %v871, %v949
    %v951 = vpop.f32.mrb[0].mxu0
    %952 = vdwg.mxu0
    %v953 = vmax.f32 %v945, 0.0
    %v954 = vmax.f32 %v950, 0.0
    %v955 = vlaneseq
    %v956 = vshrl.u32 %v955, 7
    %v957 = vsub.s32 0, %v956
    %v958 = vrot.slane %v855, %v957
    %v960 = vsel %vm572, %v953, 0
    %v963 = vsel %vm572, %v954, 0
    %965 = vmatprep.subr.mxu0 0.0
    %966 = vmatpush1.msra.mxu0 %v849
    %967 = vmatprep.subr.mxu0 0.0
    %968 = vmatpush1.msra.mxu0 %v850
    %969 = vmatprep.subr.mxu0 0.0
    %970 = vmatpush1.msra.mxu0 %v851
    %971 = vmatprep.subr.mxu0 0.0
    %972 = vmatpush1.msra.mxu0 %v852
    %973 = vmatprep.subr.mxu0 0.0
    %974 = vmatpush1.msra.mxu0 0.0
    %975 = vmatprep.subr.mxu0 0.0
    %976 = vmatpush1.msra.mxu0 0.0
    %977 = vmatprep.subr.mxu0 0.0
    %978 = vmatpush1.msra.mxu0 0.0
    %979 = vmatprep.subr.mxu0 0.0
    %980 = vmatpush1.msra.mxu0 0.0
    %981 = vmatprep.subr.mxu0 0.0
    %982 = vmatpush1.msra.mxu0 0.0
    %983 = vmatprep.subr.mxu0 0.0
    %984 = vmatpush1.msra.mxu0 0.0
    %985 = vmatprep.subr.mxu0 0.0
    %986 = vmatpush1.msra.mxu0 0.0
    %987 = vmatprep.subr.mxu0 0.0
    %988 = vmatpush1.msra.mxu0 0.0
    %989 = vmatprep.subr.mxu0 0.0
    %990 = vmatpush1.msra.mxu0 0.0
    %991 = vmatprep.subr.mxu0 0.0
    %992 = vmatpush1.msra.mxu0 0.0
    %993 = vmatprep.subr.mxu0 0.0
    %994 = vmatpush1.msra.mxu0 0.0
    %995 = vmatprep.subr.mxu0 0.0
    %996 = vmatpush1.msra.mxu0 0.0
    %997 = vmatprep.subr.mxu0 0.0
    %998 = vmatpush1.msra.mxu0 0.0
    %999 = vmatprep.subr.mxu0 0.0
    %1000 = vmatpush1.msra.mxu0 0.0
    %1001 = vmatprep.subr.mxu0 0.0
    %1002 = vmatpush1.msra.mxu0 0.0
    %1003 = vmatprep.subr.mxu0 0.0
    %1004 = vmatpush1.msra.mxu0 0.0
    %1005 = vmatprep.subr.mxu0 0.0
    %1006 = vmatpush1.msra.mxu0 0.0
    %1007 = vmatprep.subr.mxu0 0.0
    %1008 = vmatpush1.msra.mxu0 0.0
    %1009 = vmatprep.subr.mxu0 0.0
    %1010 = vmatpush1.msra.mxu0 0.0
    %1011 = vmatprep.subr.mxu0 0.0
    %1012 = vmatpush1.msra.mxu0 0.0
    %1013 = vmatprep.subr.mxu0 0.0
    %1014 = vmatpush1.msra.mxu0 0.0
    %1015 = vmatprep.subr.mxu0 0.0
    %1016 = vmatpush1.msra.mxu0 0.0
    %1017 = vmatprep.subr.mxu0 0.0
    %1018 = vmatpush1.msra.mxu0 0.0
    %1019 = vmatprep.subr.mxu0 0.0
    %1020 = vmatpush1.msra.mxu0 0.0
    %1021 = vmatprep.subr.mxu0 0.0
    %1022 = vmatpush1.msra.mxu0 0.0
    %1023 = vmatprep.subr.mxu0 0.0
    %1024 = vmatpush1.msra.mxu0 0.0
    %1025 = vmatprep.subr.mxu0 0.0
    %1026 = vmatpush1.msra.mxu0 0.0
    %1027 = vmatprep.subr.mxu0 0.0
    %1028 = vmatpush1.msra.mxu0 0.0
    %1029 = vmatprep.mubr.f32.mxu0 0.0
    %1030 = vmatmul.mubr.f32.gmra.mrb[0].mxu0 %v960
    %v1031 = vpop.f32.mrb[0].mxu0
    %v1032 = vadd.f32 %v958, %v1031
    %v1033 = vpop.f32.mrb[0].mxu0
    %1034 = vmatprep.mubr.f32.mxu0 0.0
    %1035 = vmatmul.mubr.f32.gmra.mrb[0].mxu0 %v963
    %v1036 = vpop.f32.mrb[0].mxu0
    %v1037 = vadd.f32 %v958, %v1036
    %v1038 = vpop.f32.mrb[0].mxu0
    %1039 = vdwg.mxu0
    %v1040 = vadd.f32 %v864, %v1032
    %v1041 = vadd.f32 %v865, %v1037
    %s1042 = scalar_lea.vmem %s4, 128
    %v1043 = vld [vmem:[%s1042] sm:$0xff]
    %v1044 = vld [vmem:[%s1042 + $0x8] sm:$0xff]
    %v1045 = vld [vmem:[%s1042 + $0x10] sm:$0xff]
    %v1046 = vld [vmem:[%s1042 + $0x18] sm:$0xff]
    %v1047 = vld [vmem:[%s1042 + $0x20] sm:$0xff]
    %v1048 = vld [vmem:[%s1042 + $0x28] sm:$0xff]
    %v1049 = vld [vmem:[%s1042 + $0x30] sm:$0xff]
    %v1050 = vld [vmem:[%s1042 + $0x38] sm:$0xff]
    %s1051 = scalar_lea.vmem %s5, 4
    %v1052 = vld [vmem:[%s1051] sm:$0x1]
    %v1053 = vld [vmem:[%s1051 + $0x1] sm:$0x1]
    %1054 = vrot.lane.b32.xlu0 %v646, 64
    %v1055 = vpop.permute.xlu0 %1054
    %1056 = vrot.lane.b32.xlu0 %v652, 64
    %v1057 = vpop.permute.xlu0 %1056
    %v1060 = vadd.f32 %v1040, %v1055
    %v1061 = vadd.f32 %v1041, %v1057
    %v1062 = vmax.f32 %v1060, 0.0
    %v1063 = vmax.f32 %v1061, 0.0
    %v1064 = vlaneseq
    %v1065 = vshrl.u32 %v1064, 7
    %v1066 = vsub.s32 0, %v1065
    %v1067 = vrot.slane %v1052, %v1066
    %v1069 = vsel %vm572, %v1062, 0
    %v1072 = vsel %vm572, %v1063, 0
    %1074 = vmatprep.subr.mxu0 0.0
    %1075 = vmatpush1.msra.mxu0 %v1043
    %1076 = vmatprep.subr.mxu0 0.0
    %1077 = vmatpush1.msra.mxu0 %v1044
    %1078 = vmatprep.subr.mxu0 0.0
    %1079 = vmatpush1.msra.mxu0 %v1045
    %1080 = vmatprep.subr.mxu0 0.0
    %1081 = vmatpush1.msra.mxu0 %v1046
    %1082 = vmatprep.subr.mxu0 0.0
    %1083 = vmatpush1.msra.mxu0 0.0
    %1084 = vmatprep.subr.mxu0 0.0
    %1085 = vmatpush1.msra.mxu0 0.0
    %1086 = vmatprep.subr.mxu0 0.0
    %1087 = vmatpush1.msra.mxu0 0.0
    %1088 = vmatprep.subr.mxu0 0.0
    %1089 = vmatpush1.msra.mxu0 0.0
    %1090 = vmatprep.subr.mxu0 0.0
    %1091 = vmatpush1.msra.mxu0 0.0
    %1092 = vmatprep.subr.mxu0 0.0
    %1093 = vmatpush1.msra.mxu0 0.0
    %1094 = vmatprep.subr.mxu0 0.0
    %1095 = vmatpush1.msra.mxu0 0.0
    %1096 = vmatprep.subr.mxu0 0.0
    %1097 = vmatpush1.msra.mxu0 0.0
    %1098 = vmatprep.subr.mxu0 0.0
    %1099 = vmatpush1.msra.mxu0 0.0
    %1100 = vmatprep.subr.mxu0 0.0
    %1101 = vmatpush1.msra.mxu0 0.0
    %1102 = vmatprep.subr.mxu0 0.0
    %1103 = vmatpush1.msra.mxu0 0.0
    %1104 = vmatprep.subr.mxu0 0.0
    %1105 = vmatpush1.msra.mxu0 0.0
    %1106 = vmatprep.subr.mxu0 0.0
    %1107 = vmatpush1.msra.mxu0 0.0
    %1108 = vmatprep.subr.mxu0 0.0
    %1109 = vmatpush1.msra.mxu0 0.0
    %1110 = vmatprep.subr.mxu0 0.0
    %1111 = vmatpush1.msra.mxu0 0.0
    %1112 = vmatprep.subr.mxu0 0.0
    %1113 = vmatpush1.msra.mxu0 0.0
    %1114 = vmatprep.subr.mxu0 0.0
    %1115 = vmatpush1.msra.mxu0 0.0
    %1116 = vmatprep.subr.mxu0 0.0
    %1117 = vmatpush1.msra.mxu0 0.0
    %1118 = vmatprep.subr.mxu0 0.0
    %1119 = vmatpush1.msra.mxu0 0.0
    %1120 = vmatprep.subr.mxu0 0.0
    %1121 = vmatpush1.msra.mxu0 0.0
    %1122 = vmatprep.subr.mxu0 0.0
    %1123 = vmatpush1.msra.mxu0 0.0
    %1124 = vmatprep.subr.mxu0 0.0
    %1125 = vmatpush1.msra.mxu0 0.0
    %1126 = vmatprep.subr.mxu0 0.0
    %1127 = vmatpush1.msra.mxu0 0.0
    %1128 = vmatprep.subr.mxu0 0.0
    %1129 = vmatpush1.msra.mxu0 0.0
    %1130 = vmatprep.subr.mxu0 0.0
    %1131 = vmatpush1.msra.mxu0 0.0
    %1132 = vmatprep.subr.mxu0 0.0
    %1133 = vmatpush1.msra.mxu0 0.0
    %1134 = vmatprep.subr.mxu0 0.0
    %1135 = vmatpush1.msra.mxu0 0.0
    %1136 = vmatprep.subr.mxu0 0.0
    %1137 = vmatpush1.msra.mxu0 0.0
    %1138 = vmatprep.mubr.f32.mxu0 0.0
    %1139 = vmatmul.mubr.f32.gmra.mrb[0].mxu0 %v1069
    %v1140 = vpop.f32.mrb[0].mxu0
    %v1141 = vadd.f32 %v1067, %v1140
    %v1142 = vpop.f32.mrb[0].mxu0
    %1143 = vmatprep.mubr.f32.mxu0 0.0
    %1144 = vmatmul.mubr.f32.gmra.mrb[0].mxu0 %v1072
    %v1145 = vpop.f32.mrb[0].mxu0
    %v1146 = vadd.f32 %v1067, %v1145
    %v1147 = vpop.f32.mrb[0].mxu0
    %1148 = vdwg.mxu0
    %v1149 = vmax.f32 %v1141, 0.0
    %v1150 = vmax.f32 %v1146, 0.0
    %v1151 = vlaneseq
    %v1152 = vshrl.u32 %v1151, 7
    %v1153 = vsub.s32 0, %v1152
    %v1154 = vrot.slane %v1053, %v1153
    %v1156 = vsel %vm572, %v1149, 0
    %v1159 = vsel %vm572, %v1150, 0
    %1161 = vmatprep.subr.mxu0 0.0
    %1162 = vmatpush1.msra.mxu0 %v1047
    %1163 = vmatprep.subr.mxu0 0.0
    %1164 = vmatpush1.msra.mxu0 %v1048
    %1165 = vmatprep.subr.mxu0 0.0
    %1166 = vmatpush1.msra.mxu0 %v1049
    %1167 = vmatprep.subr.mxu0 0.0
    %1168 = vmatpush1.msra.mxu0 %v1050
    %1169 = vmatprep.subr.mxu0 0.0
    %1170 = vmatpush1.msra.mxu0 0.0
    %1171 = vmatprep.subr.mxu0 0.0
    %1172 = vmatpush1.msra.mxu0 0.0
    %1173 = vmatprep.subr.mxu0 0.0
    %1174 = vmatpush1.msra.mxu0 0.0
    %1175 = vmatprep.subr.mxu0 0.0
    %1176 = vmatpush1.msra.mxu0 0.0
    %1177 = vmatprep.subr.mxu0 0.0
    %1178 = vmatpush1.msra.mxu0 0.0
    %1179 = vmatprep.subr.mxu0 0.0
    %1180 = vmatpush1.msra.mxu0 0.0
    %1181 = vmatprep.subr.mxu0 0.0
    %1182 = vmatpush1.msra.mxu0 0.0
    %1183 = vmatprep.subr.mxu0 0.0
    %1184 = vmatpush1.msra.mxu0 0.0
    %1185 = vmatprep.subr.mxu0 0.0
    %1186 = vmatpush1.msra.mxu0 0.0
    %1187 = vmatprep.subr.mxu0 0.0
    %1188 = vmatpush1.msra.mxu0 0.0
    %1189 = vmatprep.subr.mxu0 0.0
    %1190 = vmatpush1.msra.mxu0 0.0
    %1191 = vmatprep.subr.mxu0 0.0
    %1192 = vmatpush1.msra.mxu0 0.0
    %1193 = vmatprep.subr.mxu0 0.0
    %1194 = vmatpush1.msra.mxu0 0.0
    %1195 = vmatprep.subr.mxu0 0.0
    %1196 = vmatpush1.msra.mxu0 0.0
    %1197 = vmatprep.subr.mxu0 0.0
    %1198 = vmatpush1.msra.mxu0 0.0
    %1199 = vmatprep.subr.mxu0 0.0
    %1200 = vmatpush1.msra.mxu0 0.0
    %1201 = vmatprep.subr.mxu0 0.0
    %1202 = vmatpush1.msra.mxu0 0.0
    %1203 = vmatprep.subr.mxu0 0.0
    %1204 = vmatpush1.msra.mxu0 0.0
    %1205 = vmatprep.subr.mxu0 0.0
    %1206 = vmatpush1.msra.mxu0 0.0
    %1207 = vmatprep.subr.mxu0 0.0
    %1208 = vmatpush1.msra.mxu0 0.0
    %1209 = vmatprep.subr.mxu0 0.0
    %1210 = vmatpush1.msra.mxu0 0.0
    %1211 = vmatprep.subr.mxu0 0.0
    %1212 = vmatpush1.msra.mxu0 0.0
    %1213 = vmatprep.subr.mxu0 0.0
    %1214 = vmatpush1.msra.mxu0 0.0
    %1215 = vmatprep.subr.mxu0 0.0
    %1216 = vmatpush1.msra.mxu0 0.0
    %1217 = vmatprep.subr.mxu0 0.0
    %1218 = vmatpush1.msra.mxu0 0.0
    %1219 = vmatprep.subr.mxu0 0.0
    %1220 = vmatpush1.msra.mxu0 0.0
    %1221 = vmatprep.subr.mxu0 0.0
    %1222 = vmatpush1.msra.mxu0 0.0
    %1223 = vmatprep.subr.mxu0 0.0
    %1224 = vmatpush1.msra.mxu0 0.0
    %1225 = vmatprep.mubr.f32.mxu0 0.0
    %1226 = vmatmul.mubr.f32.gmra.mrb[0].mxu0 %v1156
    %v1227 = vpop.f32.mrb[0].mxu0
    %v1228 = vadd.f32 %v1154, %v1227
    %v1229 = vpop.f32.mrb[0].mxu0
    %1230 = vmatprep.mubr.f32.mxu0 0.0
    %1231 = vmatmul.mubr.f32.gmra.mrb[0].mxu0 %v1159
    %v1232 = vpop.f32.mrb[0].mxu0
    %v1233 = vadd.f32 %v1154, %v1232
    %v1234 = vpop.f32.mrb[0].mxu0
    %1235 = vdwg.mxu0
    %v1236 = vadd.f32 %v1060, %v1228
    %v1237 = vadd.f32 %v1061, %v1233
    %s1238 = scalar_lea.vmem %s4, 192
    %v1239 = vld [vmem:[%s1238] sm:$0xff]
    %v1240 = vld [vmem:[%s1238 + $0x8] sm:$0xff]
    %v1241 = vld [vmem:[%s1238 + $0x10] sm:$0xff]
    %v1242 = vld [vmem:[%s1238 + $0x18] sm:$0xff]
    %v1243 = vld [vmem:[%s1238 + $0x20] sm:$0xff]
    %v1244 = vld [vmem:[%s1238 + $0x28] sm:$0xff]
    %v1245 = vld [vmem:[%s1238 + $0x30] sm:$0xff]
    %v1246 = vld [vmem:[%s1238 + $0x38] sm:$0xff]
    %s1247 = scalar_lea.vmem %s5, 6
    %v1248 = vld [vmem:[%s1247] sm:$0x1]
    %v1249 = vld [vmem:[%s1247 + $0x1] sm:$0x1]
    %1250 = vrot.lane.b32.xlu0 %v646, 32
    %v1251 = vpop.permute.xlu0 %1250
    %1252 = vrot.lane.b32.xlu0 %v652, 32
    %v1253 = vpop.permute.xlu0 %1252
    %v1256 = vadd.f32 %v1236, %v1251
    %v1257 = vadd.f32 %v1237, %v1253
    %v1258 = vmax.f32 %v1256, 0.0
    %v1259 = vmax.f32 %v1257, 0.0
    %v1260 = vlaneseq
    %v1261 = vshrl.u32 %v1260, 7
    %v1262 = vsub.s32 0, %v1261
    %v1263 = vrot.slane %v1248, %v1262
    %v1265 = vsel %vm572, %v1258, 0
    %v1268 = vsel %vm572, %v1259, 0
    %1270 = vmatprep.subr.mxu0 0.0
    %1271 = vmatpush1.msra.mxu0 %v1239
    %1272 = vmatprep.subr.mxu0 0.0
    %1273 = vmatpush1.msra.mxu0 %v1240
    %1274 = vmatprep.subr.mxu0 0.0
    %1275 = vmatpush1.msra.mxu0 %v1241
    %1276 = vmatprep.subr.mxu0 0.0
    %1277 = vmatpush1.msra.mxu0 %v1242
    %1278 = vmatprep.subr.mxu0 0.0
    %1279 = vmatpush1.msra.mxu0 0.0
    %1280 = vmatprep.subr.mxu0 0.0
    %1281 = vmatpush1.msra.mxu0 0.0
    %1282 = vmatprep.subr.mxu0 0.0
    %1283 = vmatpush1.msra.mxu0 0.0
    %1284 = vmatprep.subr.mxu0 0.0
    %1285 = vmatpush1.msra.mxu0 0.0
    %1286 = vmatprep.subr.mxu0 0.0
    %1287 = vmatpush1.msra.mxu0 0.0
    %1288 = vmatprep.subr.mxu0 0.0
    %1289 = vmatpush1.msra.mxu0 0.0
    %1290 = vmatprep.subr.mxu0 0.0
    %1291 = vmatpush1.msra.mxu0 0.0
    %1292 = vmatprep.subr.mxu0 0.0
    %1293 = vmatpush1.msra.mxu0 0.0
    %1294 = vmatprep.subr.mxu0 0.0
    %1295 = vmatpush1.msra.mxu0 0.0
    %1296 = vmatprep.subr.mxu0 0.0
    %1297 = vmatpush1.msra.mxu0 0.0
    %1298 = vmatprep.subr.mxu0 0.0
    %1299 = vmatpush1.msra.mxu0 0.0
    %1300 = vmatprep.subr.mxu0 0.0
    %1301 = vmatpush1.msra.mxu0 0.0
    %1302 = vmatprep.subr.mxu0 0.0
    %1303 = vmatpush1.msra.mxu0 0.0
    %1304 = vmatprep.subr.mxu0 0.0
    %1305 = vmatpush1.msra.mxu0 0.0
    %1306 = vmatprep.subr.mxu0 0.0
    %1307 = vmatpush1.msra.mxu0 0.0
    %1308 = vmatprep.subr.mxu0 0.0
    %1309 = vmatpush1.msra.mxu0 0.0
    %1310 = vmatprep.subr.mxu0 0.0
    %1311 = vmatpush1.msra.mxu0 0.0
    %1312 = vmatprep.subr.mxu0 0.0
    %1313 = vmatpush1.msra.mxu0 0.0
    %1314 = vmatprep.subr.mxu0 0.0
    %1315 = vmatpush1.msra.mxu0 0.0
    %1316 = vmatprep.subr.mxu0 0.0
    %1317 = vmatpush1.msra.mxu0 0.0
    %1318 = vmatprep.subr.mxu0 0.0
    %1319 = vmatpush1.msra.mxu0 0.0
    %1320 = vmatprep.subr.mxu0 0.0
    %1321 = vmatpush1.msra.mxu0 0.0
    %1322 = vmatprep.subr.mxu0 0.0
    %1323 = vmatpush1.msra.mxu0 0.0
    %1324 = vmatprep.subr.mxu0 0.0
    %1325 = vmatpush1.msra.mxu0 0.0
    %1326 = vmatprep.subr.mxu0 0.0
    %1327 = vmatpush1.msra.mxu0 0.0
    %1328 = vmatprep.subr.mxu0 0.0
    %1329 = vmatpush1.msra.mxu0 0.0
    %1330 = vmatprep.subr.mxu0 0.0
    %1331 = vmatpush1.msra.mxu0 0.0
    %1332 = vmatprep.subr.mxu0 0.0
    %1333 = vmatpush1.msra.mxu0 0.0
    %1334 = vmatprep.mubr.f32.mxu0 0.0
    %1335 = vmatmul.mubr.f32.gmra.mrb[0].mxu0 %v1265
    %v1336 = vpop.f32.mrb[0].mxu0
    %v1337 = vadd.f32 %v1263, %v1336
    %v1338 = vpop.f32.mrb[0].mxu0
    %1339 = vmatprep.mubr.f32.mxu0 0.0
    %1340 = vmatmul.mubr.f32.gmra.mrb[0].mxu0 %v1268
    %v1341 = vpop.f32.mrb[0].mxu0
    %v1342 = vadd.f32 %v1263, %v1341
    %v1343 = vpop.f32.mrb[0].mxu0
    %1344 = vdwg.mxu0
    %v1345 = vmax.f32 %v1337, 0.0
    %v1346 = vmax.f32 %v1342, 0.0
    %v1347 = vlaneseq
    %v1348 = vshrl.u32 %v1347, 7
    %v1349 = vsub.s32 0, %v1348
    %v1350 = vrot.slane %v1249, %v1349
    %v1352 = vsel %vm572, %v1345, 0
    %v1355 = vsel %vm572, %v1346, 0
    %1357 = vmatprep.subr.mxu0 0.0
    %1358 = vmatpush1.msra.mxu0 %v1243
    %1359 = vmatprep.subr.mxu0 0.0
    %1360 = vmatpush1.msra.mxu0 %v1244
    %1361 = vmatprep.subr.mxu0 0.0
    %1362 = vmatpush1.msra.mxu0 %v1245
    %1363 = vmatprep.subr.mxu0 0.0
    %1364 = vmatpush1.msra.mxu0 %v1246
    %1365 = vmatprep.subr.mxu0 0.0
    %1366 = vmatpush1.msra.mxu0 0.0
    %1367 = vmatprep.subr.mxu0 0.0
    %1368 = vmatpush1.msra.mxu0 0.0
    %1369 = vmatprep.subr.mxu0 0.0
    %1370 = vmatpush1.msra.mxu0 0.0
    %1371 = vmatprep.subr.mxu0 0.0
    %1372 = vmatpush1.msra.mxu0 0.0
    %1373 = vmatprep.subr.mxu0 0.0
    %1374 = vmatpush1.msra.mxu0 0.0
    %1375 = vmatprep.subr.mxu0 0.0
    %1376 = vmatpush1.msra.mxu0 0.0
    %1377 = vmatprep.subr.mxu0 0.0
    %1378 = vmatpush1.msra.mxu0 0.0
    %1379 = vmatprep.subr.mxu0 0.0
    %1380 = vmatpush1.msra.mxu0 0.0
    %1381 = vmatprep.subr.mxu0 0.0
    %1382 = vmatpush1.msra.mxu0 0.0
    %1383 = vmatprep.subr.mxu0 0.0
    %1384 = vmatpush1.msra.mxu0 0.0
    %1385 = vmatprep.subr.mxu0 0.0
    %1386 = vmatpush1.msra.mxu0 0.0
    %1387 = vmatprep.subr.mxu0 0.0
    %1388 = vmatpush1.msra.mxu0 0.0
    %1389 = vmatprep.subr.mxu0 0.0
    %1390 = vmatpush1.msra.mxu0 0.0
    %1391 = vmatprep.subr.mxu0 0.0
    %1392 = vmatpush1.msra.mxu0 0.0
    %1393 = vmatprep.subr.mxu0 0.0
    %1394 = vmatpush1.msra.mxu0 0.0
    %1395 = vmatprep.subr.mxu0 0.0
    %1396 = vmatpush1.msra.mxu0 0.0
    %1397 = vmatprep.subr.mxu0 0.0
    %1398 = vmatpush1.msra.mxu0 0.0
    %1399 = vmatprep.subr.mxu0 0.0
    %1400 = vmatpush1.msra.mxu0 0.0
    %1401 = vmatprep.subr.mxu0 0.0
    %1402 = vmatpush1.msra.mxu0 0.0
    %1403 = vmatprep.subr.mxu0 0.0
    %1404 = vmatpush1.msra.mxu0 0.0
    %1405 = vmatprep.subr.mxu0 0.0
    %1406 = vmatpush1.msra.mxu0 0.0
    %1407 = vmatprep.subr.mxu0 0.0
    %1408 = vmatpush1.msra.mxu0 0.0
    %1409 = vmatprep.subr.mxu0 0.0
    %1410 = vmatpush1.msra.mxu0 0.0
    %1411 = vmatprep.subr.mxu0 0.0
    %1412 = vmatpush1.msra.mxu0 0.0
    %1413 = vmatprep.subr.mxu0 0.0
    %1414 = vmatpush1.msra.mxu0 0.0
    %1415 = vmatprep.subr.mxu0 0.0
    %1416 = vmatpush1.msra.mxu0 0.0
    %1417 = vmatprep.subr.mxu0 0.0
    %1418 = vmatpush1.msra.mxu0 0.0
    %1419 = vmatprep.subr.mxu0 0.0
    %1420 = vmatpush1.msra.mxu0 0.0
    %1421 = vmatprep.mubr.f32.mxu0 0.0
    %1422 = vmatmul.mubr.f32.gmra.mrb[0].mxu0 %v1352
    %v1423 = vpop.f32.mrb[0].mxu0
    %v1424 = vadd.f32 %v1350, %v1423
    %v1425 = vpop.f32.mrb[0].mxu0
    %1426 = vmatprep.mubr.f32.mxu0 0.0
    %1427 = vmatmul.mubr.f32.gmra.mrb[0].mxu0 %v1355
    %v1428 = vpop.f32.mrb[0].mxu0
    %v1429 = vadd.f32 %v1350, %v1428
    %v1430 = vpop.f32.mrb[0].mxu0
    %1431 = vdwg.mxu0
    %v1432 = vadd.f32 %v1256, %v1424
    %v1433 = vadd.f32 %v1257, %v1429
    %s1434 = scalar_lea.vmem %s4, 256
    %v1435 = vld [vmem:[%s1434] sm:$0xff]
    %v1436 = vld [vmem:[%s1434 + $0x8] sm:$0xff]
    %v1437 = vld [vmem:[%s1434 + $0x10] sm:$0xff]
    %v1438 = vld [vmem:[%s1434 + $0x18] sm:$0xff]
    %v1439 = vld [vmem:[%s1434 + $0x20] sm:$0xff]
    %v1440 = vld [vmem:[%s1434 + $0x28] sm:$0xff]
    %v1441 = vld [vmem:[%s1434 + $0x30] sm:$0xff]
    %v1442 = vld [vmem:[%s1434 + $0x38] sm:$0xff]
    %s1443 = scalar_lea.vmem %s5, 8
    %v1444 = vld [vmem:[%s1443] sm:$0x1]
    %v1445 = vld [vmem:[%s1443 + $0x1] sm:$0x1]
    %v1446 = vadd.f32 %v1432, %v648
    %v1447 = vadd.f32 %v1433, %v654
    %v1448 = vmax.f32 %v1446, 0.0
    %v1449 = vmax.f32 %v1447, 0.0
    %v1450 = vlaneseq
    %v1451 = vshrl.u32 %v1450, 7
    %v1452 = vsub.s32 0, %v1451
    %v1453 = vrot.slane %v1444, %v1452
    %v1455 = vsel %vm572, %v1448, 0
    %v1458 = vsel %vm572, %v1449, 0
    %1460 = vmatprep.subr.mxu0 0.0
    %1461 = vmatpush1.msra.mxu0 %v1435
    %1462 = vmatprep.subr.mxu0 0.0
    %1463 = vmatpush1.msra.mxu0 %v1436
    %1464 = vmatprep.subr.mxu0 0.0
    %1465 = vmatpush1.msra.mxu0 %v1437
    %1466 = vmatprep.subr.mxu0 0.0
    %1467 = vmatpush1.msra.mxu0 %v1438
    %1468 = vmatprep.subr.mxu0 0.0
    %1469 = vmatpush1.msra.mxu0 0.0
    %1470 = vmatprep.subr.mxu0 0.0
    %1471 = vmatpush1.msra.mxu0 0.0
    %1472 = vmatprep.subr.mxu0 0.0
    %1473 = vmatpush1.msra.mxu0 0.0
    %1474 = vmatprep.subr.mxu0 0.0
    %1475 = vmatpush1.msra.mxu0 0.0
    %1476 = vmatprep.subr.mxu0 0.0
    %1477 = vmatpush1.msra.mxu0 0.0
    %1478 = vmatprep.subr.mxu0 0.0
    %1479 = vmatpush1.msra.mxu0 0.0
    %1480 = vmatprep.subr.mxu0 0.0
    %1481 = vmatpush1.msra.mxu0 0.0
    %1482 = vmatprep.subr.mxu0 0.0
    %1483 = vmatpush1.msra.mxu0 0.0
    %1484 = vmatprep.subr.mxu0 0.0
    %1485 = vmatpush1.msra.mxu0 0.0
    %1486 = vmatprep.subr.mxu0 0.0
    %1487 = vmatpush1.msra.mxu0 0.0
    %1488 = vmatprep.subr.mxu0 0.0
    %1489 = vmatpush1.msra.mxu0 0.0
    %1490 = vmatprep.subr.mxu0 0.0
    %1491 = vmatpush1.msra.mxu0 0.0
    %1492 = vmatprep.subr.mxu0 0.0
    %1493 = vmatpush1.msra.mxu0 0.0
    %1494 = vmatprep.subr.mxu0 0.0
    %1495 = vmatpush1.msra.mxu0 0.0
    %1496 = vmatprep.subr.mxu0 0.0
    %1497 = vmatpush1.msra.mxu0 0.0
    %1498 = vmatprep.subr.mxu0 0.0
    %1499 = vmatpush1.msra.mxu0 0.0
    %1500 = vmatprep.subr.mxu0 0.0
    %1501 = vmatpush1.msra.mxu0 0.0
    %1502 = vmatprep.subr.mxu0 0.0
    %1503 = vmatpush1.msra.mxu0 0.0
    %1504 = vmatprep.subr.mxu0 0.0
    %1505 = vmatpush1.msra.mxu0 0.0
    %1506 = vmatprep.subr.mxu0 0.0
    %1507 = vmatpush1.msra.mxu0 0.0
    %1508 = vmatprep.subr.mxu0 0.0
    %1509 = vmatpush1.msra.mxu0 0.0
    %1510 = vmatprep.subr.mxu0 0.0
    %1511 = vmatpush1.msra.mxu0 0.0
    %1512 = vmatprep.subr.mxu0 0.0
    %1513 = vmatpush1.msra.mxu0 0.0
    %1514 = vmatprep.subr.mxu0 0.0
    %1515 = vmatpush1.msra.mxu0 0.0
    %1516 = vmatprep.subr.mxu0 0.0
    %1517 = vmatpush1.msra.mxu0 0.0
    %1518 = vmatprep.subr.mxu0 0.0
    %1519 = vmatpush1.msra.mxu0 0.0
    %1520 = vmatprep.subr.mxu0 0.0
    %1521 = vmatpush1.msra.mxu0 0.0
    %1522 = vmatprep.subr.mxu0 0.0
    %1523 = vmatpush1.msra.mxu0 0.0
    %1524 = vmatprep.mubr.f32.mxu0 0.0
    %1525 = vmatmul.mubr.f32.gmra.mrb[0].mxu0 %v1455
    %v1526 = vpop.f32.mrb[0].mxu0
    %v1527 = vadd.f32 %v1453, %v1526
    %v1528 = vpop.f32.mrb[0].mxu0
    %1529 = vmatprep.mubr.f32.mxu0 0.0
    %1530 = vmatmul.mubr.f32.gmra.mrb[0].mxu0 %v1458
    %v1531 = vpop.f32.mrb[0].mxu0
    %v1532 = vadd.f32 %v1453, %v1531
    %v1533 = vpop.f32.mrb[0].mxu0
    %1534 = vdwg.mxu0
    %v1535 = vmax.f32 %v1527, 0.0
    %v1536 = vmax.f32 %v1532, 0.0
    %v1537 = vlaneseq
    %v1538 = vshrl.u32 %v1537, 7
    %v1539 = vsub.s32 0, %v1538
    %v1540 = vrot.slane %v1445, %v1539
    %v1542 = vsel %vm572, %v1535, 0
    %v1545 = vsel %vm572, %v1536, 0
    %1547 = vmatprep.subr.mxu0 0.0
    %1548 = vmatpush1.msra.mxu0 %v1439
    %1549 = vmatprep.subr.mxu0 0.0
    %1550 = vmatpush1.msra.mxu0 %v1440
    %1551 = vmatprep.subr.mxu0 0.0
    %1552 = vmatpush1.msra.mxu0 %v1441
    %1553 = vmatprep.subr.mxu0 0.0
    %1554 = vmatpush1.msra.mxu0 %v1442
    %1555 = vmatprep.subr.mxu0 0.0
    %1556 = vmatpush1.msra.mxu0 0.0
    %1557 = vmatprep.subr.mxu0 0.0
    %1558 = vmatpush1.msra.mxu0 0.0
    %1559 = vmatprep.subr.mxu0 0.0
    %1560 = vmatpush1.msra.mxu0 0.0
    %1561 = vmatprep.subr.mxu0 0.0
    %1562 = vmatpush1.msra.mxu0 0.0
    %1563 = vmatprep.subr.mxu0 0.0
    %1564 = vmatpush1.msra.mxu0 0.0
    %1565 = vmatprep.subr.mxu0 0.0
    %1566 = vmatpush1.msra.mxu0 0.0
    %1567 = vmatprep.subr.mxu0 0.0
    %1568 = vmatpush1.msra.mxu0 0.0
    %1569 = vmatprep.subr.mxu0 0.0
    %1570 = vmatpush1.msra.mxu0 0.0
    %1571 = vmatprep.subr.mxu0 0.0
    %1572 = vmatpush1.msra.mxu0 0.0
    %1573 = vmatprep.subr.mxu0 0.0
    %1574 = vmatpush1.msra.mxu0 0.0
    %1575 = vmatprep.subr.mxu0 0.0
    %1576 = vmatpush1.msra.mxu0 0.0
    %1577 = vmatprep.subr.mxu0 0.0
    %1578 = vmatpush1.msra.mxu0 0.0
    %1579 = vmatprep.subr.mxu0 0.0
    %1580 = vmatpush1.msra.mxu0 0.0
    %1581 = vmatprep.subr.mxu0 0.0
    %1582 = vmatpush1.msra.mxu0 0.0
    %1583 = vmatprep.subr.mxu0 0.0
    %1584 = vmatpush1.msra.mxu0 0.0
    %1585 = vmatprep.subr.mxu0 0.0
    %1586 = vmatpush1.msra.mxu0 0.0
    %1587 = vmatprep.subr.mxu0 0.0
    %1588 = vmatpush1.msra.mxu0 0.0
    %1589 = vmatprep.subr.mxu0 0.0
    %1590 = vmatpush1.msra.mxu0 0.0
    %1591 = vmatprep.subr.mxu0 0.0
    %1592 = vmatpush1.msra.mxu0 0.0
    %1593 = vmatprep.subr.mxu0 0.0
    %1594 = vmatpush1.msra.mxu0 0.0
    %1595 = vmatprep.subr.mxu0 0.0
    %1596 = vmatpush1.msra.mxu0 0.0
    %1597 = vmatprep.subr.mxu0 0.0
    %1598 = vmatpush1.msra.mxu0 0.0
    %1599 = vmatprep.subr.mxu0 0.0
    %1600 = vmatpush1.msra.mxu0 0.0
    %1601 = vmatprep.subr.mxu0 0.0
    %1602 = vmatpush1.msra.mxu0 0.0
    %1603 = vmatprep.subr.mxu0 0.0
    %1604 = vmatpush1.msra.mxu0 0.0
    %1605 = vmatprep.subr.mxu0 0.0
    %1606 = vmatpush1.msra.mxu0 0.0
    %1607 = vmatprep.subr.mxu0 0.0
    %1608 = vmatpush1.msra.mxu0 0.0
    %1609 = vmatprep.subr.mxu0 0.0
    %1610 = vmatpush1.msra.mxu0 0.0
    %1611 = vmatprep.mubr.f32.mxu0 0.0
    %1612 = vmatmul.mubr.f32.gmra.mrb[0].mxu0 %v1542
    %v1613 = vpop.f32.mrb[0].mxu0
    %v1614 = vadd.f32 %v1540, %v1613
    %v1615 = vpop.f32.mrb[0].mxu0
    %1616 = vmatprep.mubr.f32.mxu0 0.0
    %1617 = vmatmul.mubr.f32.gmra.mrb[0].mxu0 %v1545
    %v1618 = vpop.f32.mrb[0].mxu0
    %v1619 = vadd.f32 %v1540, %v1618
    %v1620 = vpop.f32.mrb[0].mxu0
    %1621 = vdwg.mxu0
    %v1622 = vadd.f32 %v1446, %v1614
    %v1623 = vadd.f32 %v1447, %v1619
    %v1624 = vld [vmem:[%s6 + $0x4] sm:$0x1]
    %v1625 = vld [vmem:[%s6 + $0x5] sm:$0x1]
    %v1626 = vmax.f32 %v1622, 0.0
    %v1627 = vmax.f32 %v1623, 0.0
    %v1628 = vlaneseq
    %v1629 = vshrl.u32 %v1628, 7
    %v1630 = vsub.s32 0, %v1629
    %v1631 = vrot.slane %v1624, %v1630
    %v1632 = vmul.f32 %v1626, %v1631
    %v1633 = vmul.f32 %v1627, %v1631
    %v1634 = vsel %vm572, %v1632, 0.0
    %1635 = vadd.xlane.f32.xlu0 %v1634
    %v1636 = vpop.xlane.xlu0 %1635
    %v1637 = vsel %vm572, %v1633, 0.0
    %1638 = vadd.xlane.f32.xlu0 %v1637
    %v1639 = vpop.xlane.xlu0 %1638
    %1641 = vset.pattern.permute.xlu0 0
    %1642 = vperm.xlu0 %1641, %v1625
    %v1643 = vpop.permute.xlu0 %1642
    %v1644 = vlaneseq
    %v1645 = vshrl.u32 %v1644, 7
    %v1646 = vsub.s32 0, %v1645
    %v1647 = vrot.slane %v1643, %v1646
    %v1649 = vadd.f32 %v1636, %v1647
    %v1650 = vadd.f32 %v1639, %v1647
    %1653 = vset.pattern.permute.xlu0 0
    %1654 = vperm.xlu0 %1653, %v1649
    %v1655 = vpop.permute.xlu0 %1654
    %1656 = vset.pattern.permute.xlu0 0
    %1657 = vperm.xlu0 %1656, %v1650
    %v1658 = vpop.permute.xlu0 %1657
    %v1659 = vlaneseq
    %v1660 = vshrl.u32 %v1659, 7
    %v1661 = vsub.s32 %v225, %v1660
    %v1662 = vrot.slane %v1655, %v1661
    %v1663 = vlaneseq
    %v1664 = vshrl.u32 %v1663, 7
    %v1665 = vsub.s32 %v230, %v1664
    %v1666 = vrot.slane %v1658, %v1665
    %v1667 = vsel %vm235, %v1666, %v1662
    %vm1669 = vcmask 122880
    %1670 = vst.msk [vmem:[#allocation2] sm:$0x1] %vm1669, %v1667
    // Predicated region
    $region30: #{tpu_custom_call.1} parent=1 // pred_check
      _
    $region31: #{tpu_custom_call.1} parent=1 // pred_check_branch
      %1672 = sbr.rel (0) target = $region33
    $region32: #{tpu_custom_call.1} parent=1 // pred_region
      %s1674 = ssub.s32 16, 16
      %1675 = vsyncadd [#allocation3], %s1674
      %s1677 = sshll.u32 [#allocation2], 4
      %s1678 = int_to_ptr.vmem [resolvable:$true] %s1677
      %1680 = dma.vmem_to_hbm [thread:$0]  %s1678, 16, %s7, [#allocation3]
    $region33: #{tpu_custom_call.1} parent=1 // pred_fallthru
      _
    // Predicated region
    $region34: #{tpu_custom_call.1} parent=1 // pred_check
      _
    $region35: #{tpu_custom_call.1} parent=1 // pred_check_branch
      %1682 = sbr.rel (0) target = $region37
    $region36: #{tpu_custom_call.1} parent=1 // pred_region
      %1683 = dma.done [#allocation3], 16
    $region37: #{tpu_custom_call.1} parent=1 // pred_fallthru
      _
    %1684 = vsyncpa [#allocation3], 1

</llo_original>
